<compile_context>
chip_gen: v6e
topology: v6e:2x2x1
jax: 0.10.0
libtpu: 0.0.40
codegen_flags: <defaults>
</compile_context>

<pallas_src>
import math

import jax
import jax.numpy as jnp
from jax.experimental import pallas as pl
from jax.experimental.pallas import tpu as pltpu


# ----------------------------------------------------------------------------
# small helpers
# ----------------------------------------------------------------------------
def _round_up(x, m):
    return (x + m - 1) // m * m


def _pick_tile(n_rows, num_groups, max_tile=256):
    """Row tile: as large as possible (MXU utilization) while keeping per-group
    padding waste bounded for tiny demo problems."""
    per_group = max(1, n_rows // max(1, num_groups))
    return int(min(max_tile, max(8, _round_up(min(per_group, max_tile), 8))))


def _build_grouping(key, num_groups, tile):
    """Sort rows by `key` and pad every group to a multiple of `tile`.

    Returns (gather, valid, inv, blk_group, length_padded) where
      gather[slot]  : original row index feeding padded slot (0 for pad slots)
      valid[slot]   : slot holds a real row
      inv[row]      : padded slot of original row
      blk_group[b]  : group id of row-tile b (every tile is single-group)
    All shapes are static: length_padded = round_up(L + G*(tile-1), tile).
    """
    key = key.astype(jnp.int32)
    length = key.shape[0]
    length_padded = _round_up(length + num_groups * (tile - 1), tile)

    order = jnp.argsort(key).astype(jnp.int32)
    skey = key[order]
    counts = jnp.bincount(key, length=num_groups).astype(jnp.int32)
    padded = ((counts + tile - 1) // tile) * tile
    grp_start = jnp.cumsum(counts) - counts
    pad_start = jnp.cumsum(padded) - padded
    pad_end = jnp.cumsum(padded)

    pos = jnp.arange(length, dtype=jnp.int32)
    slot = (pad_start[skey] + (pos - grp_start[skey])).astype(jnp.int32)

    gather = jnp.full((length_padded,), -1, jnp.int32).at[slot].set(order)
    valid = gather >= 0
    gather = jnp.where(valid, gather, 0)
    inv = jnp.zeros((length,), jnp.int32).at[order].set(slot)

    n_blk = length_padded // tile
    blk_group = jnp.searchsorted(pad_end, jnp.arange(n_blk, dtype=jnp.int32) * tile,
                                 side="right")
    blk_group = jnp.minimum(blk_group, num_groups - 1).astype(jnp.int32)
    return gather, valid, inv, blk_group, length_padded


# ----------------------------------------------------------------------------
# Pallas kernels (one weight set per tile, selected via scalar-prefetch meta)
# ----------------------------------------------------------------------------
def _adapt_kernel(bt_ref, x_ref, w_ref, b_ref, o_ref):
    """res = tanh(x @ W[type_of_tile] + b[type_of_tile])."""
    del bt_ref  # consumed by the index_maps only
    y = jnp.dot(x_ref[...], w_ref[0], preferred_element_type=jnp.float32)
    o_ref[...] = jnp.tanh(y + b_ref[0])


def _message_kernel(qt_ref, kt_ref, rl_ref,
                    xi_ref, xs_ref,
                    wq_ref, bq_ref, wk_ref, bk_ref, wv_ref, bv_ref,
                    ra_ref, rm_ref, rp_ref, o_ref):
    """HGTConv.message for one single-(dst_type, src_type, relation) edge tile.

    Output slab: [:, :n_hid]  = per-head message  (v @ rel_msg blockdiag)
                 [:, n_hid:]  = attention logit of each head, broadcast over
                                its d_k lanes (rel_pri / sqrt(d_k) folded in).
    """
    del qt_ref, kt_ref, rl_ref
    n_hid = wq_ref.shape[2]
    xi = xi_ref[...]                                   # (tile, n_hid) bf16
    xs = xs_ref[...]                                   # (tile, n_hid) bf16 = x_j + RTE

    q = jnp.dot(xi, wq_ref[0], preferred_element_type=jnp.float32) + bq_ref[0]
    k = jnp.dot(xs, wk_ref[0], preferred_element_type=jnp.float32) + bk_ref[0]
    v = jnp.dot(xs, wv_ref[0], preferred_element_type=jnp.float32) + bv_ref[0]

    k_r = jnp.dot(k.astype(jnp.bfloat16), ra_ref[0],
                  preferred_element_type=jnp.float32)
    logits = jnp.dot((q * k_r).astype(jnp.bfloat16), rp_ref[0],
                     preferred_element_type=jnp.float32)            # (tile, n_hid)
    msg = jnp.dot(v.astype(jnp.bfloat16), rm_ref[0],
                  preferred_element_type=jnp.float32)               # (tile, n_hid)

    o_ref[:, 0:n_hid] = msg
    o_ref[:, n_hid:2 * n_hid] = logits


def _update_kernel(bt_ref, g_ref, x_ref, w_ref, b_ref, a_ref, o_ref):
    """res = a_lin[type](gelu_aggr) * sigmoid(skip[type]) + x * (1 - sigmoid)."""
    del bt_ref
    trans = jnp.dot(g_ref[...], w_ref[0], preferred_element_type=jnp.float32)
    trans = trans + b_ref[0]
    alpha = a_ref[0]                                   # (1, 1) f32
    o_ref[...] = trans * alpha + x_ref[...] * (1.0 - alpha)


# ----------------------------------------------------------------------------
# pallas_call wrappers
# ----------------------------------------------------------------------------
def adapt_forward(x, blk_type, w, b, *, tile):
    n_pad, in_dim = x.shape
    n_hid = w.shape[2]
    return pl.pallas_call(
        _adapt_kernel,
        out_shape=jax.ShapeDtypeStruct((n_pad, n_hid), jnp.float32),
        grid_spec=pltpu.PrefetchScalarGridSpec(
            num_scalar_prefetch=1,
            grid=(n_pad // tile,),
            in_specs=[
                pl.BlockSpec((tile, in_dim), lambda i, bt: (i, 0)),
                pl.BlockSpec((1, in_dim, n_hid), lambda i, bt: (bt[i], 0, 0)),
                pl.BlockSpec((1, 1, n_hid), lambda i, bt: (bt[i], 0, 0)),
            ],
            out_specs=pl.BlockSpec((tile, n_hid), lambda i, bt: (i, 0)),
        ),
        compiler_params=pltpu.CompilerParams(dimension_semantics=("parallel",)),
    )(blk_type, x, w, b)


def message_forward(xi, xs, blk_qt, blk_kt, blk_rl,
                    wq, bq, wk, bk, wv, bv, rel_att, rel_msg, rel_post, *, tile):
    e_pad, n_hid = xi.shape

    row = lambda width: pl.BlockSpec((tile, width), lambda i, qt, kt, rl: (i, 0))
    w_q = pl.BlockSpec((1, n_hid, n_hid), lambda i, qt, kt, rl: (qt[i], 0, 0))
    b_q = pl.BlockSpec((1, 1, n_hid), lambda i, qt, kt, rl: (qt[i], 0, 0))
    w_kv = pl.BlockSpec((1, n_hid, n_hid), lambda i, qt, kt, rl: (kt[i], 0, 0))
    b_kv = pl.BlockSpec((1, 1, n_hid), lambda i, qt, kt, rl: (kt[i], 0, 0))
    w_r = pl.BlockSpec((1, n_hid, n_hid), lambda i, qt, kt, rl: (rl[i], 0, 0))

    # explicit VMEM budget (double-buffered blocks + slack), capped below physical
    blk_bytes = (2 * tile * n_hid * 2            # xi, xs (bf16)
                 + 6 * n_hid * n_hid * 2         # Wq/Wk/Wv + rel_att/rel_msg/rel_post
                 + 3 * n_hid * 4                 # biases (f32)
                 + tile * 2 * n_hid * 4)         # output slab (f32)
    vmem_limit = int(min(112 * 1024 * 1024,
                         max(32 * 1024 * 1024, 2 * blk_bytes + (4 << 20))))

    return pl.pallas_call(
        _message_kernel,
        out_shape=jax.ShapeDtypeStruct((e_pad, 2 * n_hid), jnp.float32),
        grid_spec=pltpu.PrefetchScalarGridSpec(
            num_scalar_prefetch=3,
            grid=(e_pad // tile,),
            in_specs=[row(n_hid), row(n_hid),
                      w_q, b_q, w_kv, b_kv, w_kv, b_kv,
                      w_r, w_r, w_r],
            out_specs=row(2 * n_hid),
        ),
        compiler_params=pltpu.CompilerParams(
            dimension_semantics=("parallel",),
            vmem_limit_bytes=vmem_limit,
        ),
    )(blk_qt, blk_kt, blk_rl, xi, xs, wq, bq, wk, bk, wv, bv,
      rel_att, rel_msg, rel_post)


def update_forward(g, x, blk_type, wa, ba, alphas, *, tile):
    n_pad, n_hid = x.shape
    return pl.pallas_call(
        _update_kernel,
        out_shape=jax.ShapeDtypeStruct((n_pad, n_hid), jnp.float32),
        grid_spec=pltpu.PrefetchScalarGridSpec(
            num_scalar_prefetch=1,
            grid=(n_pad // tile,),
            in_specs=[
                pl.BlockSpec((tile, n_hid), lambda i, bt: (i, 0)),
                pl.BlockSpec((tile, n_hid), lambda i, bt: (i, 0)),
                pl.BlockSpec((1, n_hid, n_hid), lambda i, bt: (bt[i], 0, 0)),
                pl.BlockSpec((1, 1, n_hid), lambda i, bt: (bt[i], 0, 0)),
                pl.BlockSpec((1, 1, 1), lambda i, bt: (bt[i], 0, 0)),
            ],
            out_specs=pl.BlockSpec((tile, n_hid), lambda i, bt: (i, 0)),
        ),
        compiler_params=pltpu.CompilerParams(dimension_semantics=("parallel",)),
    )(blk_type, g, x, wa, ba, alphas)


# ----------------------------------------------------------------------------
# Model glue (grouping, gathers, segment softmax, scatter-add) — plain JAX
# ----------------------------------------------------------------------------
def hgt_layer(lp, x, n_blk_type, e_src_slot, e_dst_slot, e_dst_seg, e_time,
              blk_qt, blk_kt, blk_rl, n_heads, *, tile_nodes, tile_edges):
    n_pad, n_hid = x.shape
    d_k = n_hid // n_heads
    sqrt_dk = math.sqrt(d_k)

    # RTE: Linear(sin-table) once per layer -> (max_len, n_hid), fused into the
    # source-feature gather below (no per-edge 2*n_hid embedding traffic).
    rte_out = lp["rte_table"] @ lp["rte_lin_W"] + lp["rte_lin_b"]

    xi = x[e_dst_slot].astype(jnp.bfloat16)                       # target i
    xs = (x[e_src_slot] + rte_out[e_time]).astype(jnp.bfloat16)   # source j + RTE

    # fold relation_pri / sqrt(d_k) and per-head sum->broadcast into one matrix
    head_of = jnp.arange(n_hid, dtype=jnp.int32) // d_k
    same_head = head_of[:, None] == head_of[None, :]
    rel_post = jnp.where(same_head[None, :, :],
                         (lp["rel_pri"] / sqrt_dk)[:, head_of][:, None, :],
                         0.0).astype(jnp.bfloat16)

    out = message_forward(
        xi, xs, blk_qt, blk_kt, blk_rl,
        lp["Wq"].astype(jnp.bfloat16), lp["bq"],
        lp["Wk"].astype(jnp.bfloat16), lp["bk"],
        lp["Wv"].astype(jnp.bfloat16), lp["bv"],
        lp["rel_att_blk"].astype(jnp.bfloat16),
        lp["rel_msg_blk"].astype(jnp.bfloat16),
        rel_post, tile=tile_edges)
    msg, logits = out[:, :n_hid], out[:, n_hid:]

    # torch_geometric softmax over edges sharing a target node (per head; the
    # head logit is broadcast over its d_k lanes so the per-column segment
    # softmax is exact).  Pad edges go to the dummy segment n_pad.
    num_seg = n_pad + 1
    seg_max = jax.ops.segment_max(logits, e_dst_seg, num_segments=num_seg)
    a = jnp.exp(logits - seg_max[e_dst_seg])
    seg_sum = jax.ops.segment_sum(a, e_dst_seg, num_segments=num_seg)
    att = a / (seg_sum[e_dst_seg] + 1e-16)

    aggr = jax.ops.segment_sum(msg * att, e_dst_seg, num_segments=num_seg)[:n_pad]
    g = jax.nn.gelu(aggr, approximate=False)          # exact erf GELU (F.gelu)

    alphas = jax.nn.sigmoid(lp["skip"]).reshape(-1, 1, 1)
    return update_forward(g.astype(jnp.bfloat16), x, n_blk_type,
                          lp["Wa"].astype(jnp.bfloat16), lp["ba"], alphas,
                          tile=tile_nodes)


def gnn_forward(params, node_feature, node_type, edge_time, edge_index, edge_type,
                num_types, num_relations, n_heads,
                *, tile_nodes=None, tile_edges=None):
    n_nodes = node_feature.shape[0]
    n_edges = edge_index.shape[1]

    # ---- group nodes by type (one weight set per row tile) ----
    tn = tile_nodes or _pick_tile(n_nodes, num_types)
    n_gather, _, n_inv, n_blk_type, n_pad = _build_grouping(node_type, num_types, tn)
    feat_sorted = node_feature[n_gather]

    # ---- group edges by (target_type, source_type, relation) ----
    src, dst = edge_index[0], edge_index[1]
    ekey = (node_type[dst] * num_types + node_type[src]) * num_relations + edge_type
    n_groups_e = num_types * num_types * num_relations
    te = tile_edges or _pick_tile(n_edges, n_groups_e)
    e_gather, e_valid, _, e_blk_grp, e_pad = _build_grouping(ekey, n_groups_e, te)

    blk_qt = (e_blk_grp // (num_types * num_relations)).astype(jnp.int32)
    blk_kt = ((e_blk_grp // num_relations) % num_types).astype(jnp.int32)
    blk_rl = (e_blk_grp % num_relations).astype(jnp.int32)

    e_src_slot = n_inv[src[e_gather]]
    e_dst_slot = n_inv[dst[e_gather]]
    e_dst_seg = jnp.where(e_valid, e_dst_slot, n_pad)        # pad edges -> dummy
    e_time = edge_time[e_gather]

    # ---- adapt_ws: per-node-type Linear + tanh (dropout identity) ----
    x = adapt_forward(feat_sorted.astype(jnp.bfloat16), n_blk_type,
                      params["adapt_W"].astype(jnp.bfloat16), params["adapt_b"],
                      tile=tn)

    for lp in params["layers"]:
        x = hgt_layer(lp, x, n_blk_type, e_src_slot, e_dst_slot, e_dst_seg, e_time,
                      blk_qt, blk_kt, blk_rl, n_heads,
                      tile_nodes=tn, tile_edges=te)

    return x[n_inv]        # back to original node ordering


# ----------------------------------------------------------------------------
# Deterministic parameter construction
# ----------------------------------------------------------------------------
def _blockdiag(rel):
    """(R, H, dk, dk) -> (R, H*dk, H*dk) block-diagonal (per-head bmm as one matmul)."""
    num_rel, n_heads, d_k, _ = rel.shape
    out = jnp.zeros((num_rel, n_heads * d_k, n_heads * d_k), jnp.float32)
    for h in range(n_heads):
        out = out.at[:, h * d_k:(h + 1) * d_k, h * d_k:(h + 1) * d_k].set(rel[:, h])
    return out


def init_params(key, in_dim, n_hid, num_types, num_relations, n_heads, n_layers,
                max_len=240):
    d_k = n_hid // n_heads
    keys = iter(jax.random.split(key, 4096))

    def lin(in_f, out_f):
        bound = 1.0 / math.sqrt(in_f)
        w = jax.random.uniform(next(keys), (in_f, out_f), jnp.float32, -bound, bound)
        b = jax.random.uniform(next(keys), (out_f,), jnp.float32, -bound, bound)
        return w, b

    def stack_lin(n, in_f, out_f):
        ws, bs = zip(*[lin(in_f, out_f) for _ in range(n)])
        return jnp.stack(ws), jnp.stack(bs).reshape(n, 1, out_f)

    adapt_W, adapt_b = stack_lin(num_types, in_dim, n_hid)
    params = {"adapt_W": adapt_W, "adapt_b": adapt_b, "layers": []}

    # RelTemporalEncoding sinusoid table.  The div_term expression reproduces the
    # PyTorch module VERBATIM, including its operator precedence and the float32
    # overflow of 10000**x -> inf -> 1/inf = 0 for most columns.
    position = jnp.arange(0.0, max_len, dtype=jnp.float32)[:, None]
    div_term = 1.0 / (10000.0 ** jnp.arange(0.0, n_hid * 2, 2.0, dtype=jnp.float32)
                      / n_hid / 2.0)
    tab = jnp.zeros((max_len, n_hid * 2), jnp.float32)
    tab = tab.at[:, 0::2].set(jnp.sin(position * div_term) / math.sqrt(n_hid))
    tab = tab.at[:, 1::2].set(jnp.cos(position * div_term) / math.sqrt(n_hid))

    glorot = math.sqrt(6.0 / (d_k + d_k))
    for _ in range(n_layers):
        Wk, bk = stack_lin(num_types, n_hid, n_hid)
        Wq, bq = stack_lin(num_types, n_hid, n_hid)
        Wv, bv = stack_lin(num_types, n_hid, n_hid)
        Wa, ba = stack_lin(num_types, n_hid, n_hid)
        rel_att = jax.random.uniform(next(keys), (num_relations, n_heads, d_k, d_k),
                                     jnp.float32, -glorot, glorot)
        rel_msg = jax.random.uniform(next(keys), (num_relations, n_heads, d_k, d_k),
                                     jnp.float32, -glorot, glorot)
        rte_W, rte_b = lin(n_hid * 2, n_hid)
        params["layers"].append(dict(
            Wk=Wk, bk=bk, Wq=Wq, bq=bq, Wv=Wv, bv=bv, Wa=Wa, ba=ba,
            rel_att_blk=_blockdiag(rel_att), rel_msg_blk=_blockdiag(rel_msg),
            rel_pri=jnp.ones((num_relations, n_heads), jnp.float32),
            skip=jnp.ones((num_types,), jnp.float32),
            rte_table=tab, rte_lin_W=rte_W, rte_lin_b=rte_b))
    return params


# ----------------------------------------------------------------------------
if __name__ == "__main__":
    in_dim, n_hid = 16, 32
    num_types, num_relations, n_heads, n_layers = 2, 2, 4, 2
    n_nodes, n_edges, max_len = 16, 32, 240

    root = jax.random.PRNGKey(0)
    k_feat, k_ntype, k_eidx, k_etype, k_etime, k_par = jax.random.split(root, 6)

    node_feature = jax.random.normal(k_feat, (n_nodes, in_dim), jnp.float32)
    node_type = jax.random.randint(k_ntype, (n_nodes,), 0, num_types, jnp.int32)
    edge_index = jax.random.randint(k_eidx, (2, n_edges), 0, n_nodes, jnp.int32)
    edge_type = jax.random.randint(k_etype, (n_edges,), 0, num_relations, jnp.int32)
    edge_time = jax.random.randint(k_etime, (n_edges,), 0, max_len, jnp.int32)

    params = init_params(k_par, in_dim, n_hid, num_types, num_relations,
                         n_heads, n_layers, max_len)

    fwd = jax.jit(lambda p, nf, nt, et, ei, ety: gnn_forward(
        p, nf, nt, et, ei, ety, num_types, num_relations, n_heads))

    out = fwd(params, node_feature, node_type, edge_time, edge_index, edge_type)
    out = jax.block_until_ready(out)
    assert out.shape == (n_nodes, n_hid) and bool(jnp.all(jnp.isfinite(out)))
    print("KERNEL_OK")
</pallas_src>

<mosaic_0001>
module attributes {stable_mosaic.version = 11 : i64} {
  func.func private @main(%arg0: i32) attributes {dimension_semantics = [#tpu.dimension_semantics<core_parallel>], iteration_bounds = array<i64: 2>, tpu.core_type = #tpu.core_type<sc_scalar_subcore>, window_params = []} {
    return
  }
}

module attributes {stable_mosaic.version = 11 : i64} {
  func.func private @main(%arg0: i32) attributes {dimension_semantics = [#tpu.dimension_semantics<core_parallel>], iteration_bounds = array<i64: 2>, tpu.core_type = #tpu.core_type<sc_scalar_subcore>, window_params = []} {
    return
  }
}

module attributes {stable_mosaic.version = 11 : i64} {
  func.func @_adapt_kernel(%arg0: i32, %arg1: memref<4xi32, #tpu.memory_space<smem>>, %arg2: memref<8x16xbf16, #tpu.memory_space<vmem>>, %arg3: memref<1x16x32xbf16, #tpu.memory_space<vmem>>, %arg4: memref<1x1x32xf32, #tpu.memory_space<vmem>>, %arg5: memref<8x32xf32, #tpu.memory_space<vmem>>) attributes {dimension_semantics = [#tpu.dimension_semantics<parallel>], iteration_bounds = array<i64: 4>, scalar_prefetch = 1 : i64, scratch_operands = 0 : i64, tpu.core_type = #tpu.core_type<tc>, window_params = [{transform_indices = @transform_0, window_bounds = array<i64: 8, 16>}, {transform_indices = @transform_1, window_bounds = array<i64: 1, 16, 32>}, {transform_indices = @transform_2, window_bounds = array<i64: 1, 1, 32>}, {transform_indices = @transform_3, window_bounds = array<i64: 8, 32>}]} {
    %c0 = arith.constant 0 : index
    %c0_0 = arith.constant 0 : index
    %0 = vector.load %arg2[%c0, %c0_0] : memref<8x16xbf16, #tpu.memory_space<vmem>>, vector<8x16xbf16>
    %c0_1 = arith.constant 0 : index
    %c0_2 = arith.constant 0 : index
    %c0_3 = arith.constant 0 : index
    %1 = vector.load %arg3[%c0_1, %c0_2, %c0_3] : memref<1x16x32xbf16, #tpu.memory_space<vmem>>, vector<1x16x32xbf16>
    %2 = vector.shape_cast %1 : vector<1x16x32xbf16> to vector<16x32xbf16>
    %cst = arith.constant dense<0.000000e+00> : vector<8x32xf32>
    %3 = tpu.matmul %0, %2, %cst {dimension_numbers = #tpu.dot_dimension_numbers<[1], [0], [0], [1], [0, 0, 1, 1], [], []>} : vector<8x16xbf16>, vector<16x32xbf16>, vector<8x32xf32> -> vector<8x32xf32>
    %c0_4 = arith.constant 0 : index
    %c0_5 = arith.constant 0 : index
    %c0_6 = arith.constant 0 : index
    %4 = vector.load %arg4[%c0_4, %c0_5, %c0_6] : memref<1x1x32xf32, #tpu.memory_space<vmem>>, vector<1x1x32xf32>
    %5 = vector.shape_cast %4 : vector<1x1x32xf32> to vector<1x32xf32>
    %6 = vector.broadcast %5 : vector<1x32xf32> to vector<8x32xf32>
    %7 = arith.addf %3, %6 : vector<8x32xf32>
    %8 = math.tanh %7 : vector<8x32xf32>
    %c0_7 = arith.constant 0 : index
    %c0_8 = arith.constant 0 : index
    %9 = vector.load %arg5[%c0_7, %c0_8] : memref<8x32xf32, #tpu.memory_space<vmem>>, vector<8x32xf32>
    tpu.vector_store %arg5[%c0_7, %c0_8], %8 {strides = array<i32>} : memref<8x32xf32, #tpu.memory_space<vmem>>, vector<8x32xf32>,
    return
  }
  func.func @transform_0(%arg0: i32, %arg1: memref<4xi32, #tpu.memory_space<smem>>) -> (i32, i32) {
    %c0_i32 = arith.constant 0 : i32
    %c0_i32_0 = arith.constant 0 : i32
    return %arg0, %c0_i32 : i32, i32
  }
  func.func @transform_1(%arg0: i32, %arg1: memref<4xi32, #tpu.memory_space<smem>>) -> (i32, i32, i32) {
    %0 = arith.index_cast %arg0 : i32 to index
    %1 = memref.load %arg1[%0] : memref<4xi32, #tpu.memory_space<smem>>
    %c0_i32 = arith.constant 0 : i32
    %c0_i32_0 = arith.constant 0 : i32
    %c0_i32_1 = arith.constant 0 : i32
    return %1, %c0_i32, %c0_i32_0 : i32, i32, i32
  }
  func.func @transform_2(%arg0: i32, %arg1: memref<4xi32, #tpu.memory_space<smem>>) -> (i32, i32, i32) {
    %0 = arith.index_cast %arg0 : i32 to index
    %1 = memref.load %arg1[%0] : memref<4xi32, #tpu.memory_space<smem>>
    %c0_i32 = arith.constant 0 : i32
    %c0_i32_0 = arith.constant 0 : i32
    %c0_i32_1 = arith.constant 0 : i32
    return %1, %c0_i32, %c0_i32_0 : i32, i32, i32
  }
  func.func @transform_3(%arg0: i32, %arg1: memref<4xi32, #tpu.memory_space<smem>>) -> (i32, i32) {
    %c0_i32 = arith.constant 0 : i32
    %c0_i32_0 = arith.constant 0 : i32
    return %arg0, %c0_i32 : i32, i32
  }
}

module attributes {stable_mosaic.version = 11 : i64} {
  func.func @_message_kernel(%arg0: i32, %arg1: memref<11xi32, #tpu.memory_space<smem>>, %arg2: memref<11xi32, #tpu.memory_space<smem>>, %arg3: memref<11xi32, #tpu.memory_space<smem>>, %arg4: memref<8x32xbf16, #tpu.memory_space<vmem>>, %arg5: memref<8x32xbf16, #tpu.memory_space<vmem>>, %arg6: memref<1x32x32xbf16, #tpu.memory_space<vmem>>, %arg7: memref<1x1x32xf32, #tpu.memory_space<vmem>>, %arg8: memref<1x32x32xbf16, #tpu.memory_space<vmem>>, %arg9: memref<1x1x32xf32, #tpu.memory_space<vmem>>, %arg10: memref<1x32x32xbf16, #tpu.memory_space<vmem>>, %arg11: memref<1x1x32xf32, #tpu.memory_space<vmem>>, %arg12: memref<1x32x32xbf16, #tpu.memory_space<vmem>>, %arg13: memref<1x32x32xbf16, #tpu.memory_space<vmem>>, %arg14: memref<1x32x32xbf16, #tpu.memory_space<vmem>>, %arg15: memref<8x64xf32, #tpu.memory_space<vmem>>) attributes {dimension_semantics = [#tpu.dimension_semantics<parallel>], iteration_bounds = array<i64: 11>, scalar_prefetch = 3 : i64, scratch_operands = 0 : i64, tpu.core_type = #tpu.core_type<tc>, window_params = [{transform_indices = @transform_0, window_bounds = array<i64: 8, 32>}, {transform_indices = @transform_1, window_bounds = array<i64: 8, 32>}, {transform_indices = @transform_2, window_bounds = array<i64: 1, 32, 32>}, {transform_indices = @transform_3, window_bounds = array<i64: 1, 1, 32>}, {transform_indices = @transform_4, window_bounds = array<i64: 1, 32, 32>}, {transform_indices = @transform_5, window_bounds = array<i64: 1, 1, 32>}, {transform_indices = @transform_6, window_bounds = array<i64: 1, 32, 32>}, {transform_indices = @transform_7, window_bounds = array<i64: 1, 1, 32>}, {transform_indices = @transform_8, window_bounds = array<i64: 1, 32, 32>}, {transform_indices = @transform_9, window_bounds = array<i64: 1, 32, 32>}, {transform_indices = @transform_10, window_bounds = array<i64: 1, 32, 32>}, {transform_indices = @transform_11, window_bounds = array<i64: 8, 64>}]} {
    %c0 = arith.constant 0 : index
    %c0_0 = arith.constant 0 : index
    %0 = vector.load %arg4[%c0, %c0_0] : memref<8x32xbf16, #tpu.memory_space<vmem>>, vector<8x32xbf16>
    %c0_1 = arith.constant 0 : index
    %c0_2 = arith.constant 0 : index
    %1 = vector.load %arg5[%c0_1, %c0_2] : memref<8x32xbf16, #tpu.memory_space<vmem>>, vector<8x32xbf16>
    %c0_3 = arith.constant 0 : index
    %c0_4 = arith.constant 0 : index
    %c0_5 = arith.constant 0 : index
    %2 = vector.load %arg6[%c0_3, %c0_4, %c0_5] : memref<1x32x32xbf16, #tpu.memory_space<vmem>>, vector<1x32x32xbf16>
    %3 = vector.shape_cast %2 : vector<1x32x32xbf16> to vector<32x32xbf16>
    %cst = arith.constant dense<0.000000e+00> : vector<8x32xf32>
    %4 = tpu.matmul %0, %3, %cst {dimension_numbers = #tpu.dot_dimension_numbers<[1], [0], [0], [1], [0, 0, 1, 1], [], []>} : vector<8x32xbf16>, vector<32x32xbf16>, vector<8x32xf32> -> vector<8x32xf32>
    %c0_6 = arith.constant 0 : index
    %c0_7 = arith.constant 0 : index
    %c0_8 = arith.constant 0 : index
    %5 = vector.load %arg7[%c0_6, %c0_7, %c0_8] : memref<1x1x32xf32, #tpu.memory_space<vmem>>, vector<1x1x32xf32>
    %6 = vector.shape_cast %5 : vector<1x1x32xf32> to vector<1x32xf32>
    %7 = vector.broadcast %6 : vector<1x32xf32> to vector<8x32xf32>
    %8 = arith.addf %4, %7 : vector<8x32xf32>
    %c0_9 = arith.constant 0 : index
    %c0_10 = arith.constant 0 : index
    %c0_11 = arith.constant 0 : index
    %9 = vector.load %arg8[%c0_9, %c0_10, %c0_11] : memref<1x32x32xbf16, #tpu.memory_space<vmem>>, vector<1x32x32xbf16>
    %10 = vector.shape_cast %9 : vector<1x32x32xbf16> to vector<32x32xbf16>
    %cst_12 = arith.constant dense<0.000000e+00> : vector<8x32xf32>
    %11 = tpu.matmul %1, %10, %cst_12 {dimension_numbers = #tpu.dot_dimension_numbers<[1], [0], [0], [1], [0, 0, 1, 1], [], []>} : vector<8x32xbf16>, vector<32x32xbf16>, vector<8x32xf32> -> vector<8x32xf32>
    %c0_13 = arith.constant 0 : index
    %c0_14 = arith.constant 0 : index
    %c0_15 = arith.constant 0 : index
    %12 = vector.load %arg9[%c0_13, %c0_14, %c0_15] : memref<1x1x32xf32, #tpu.memory_space<vmem>>, vector<1x1x32xf32>
    %13 = vector.shape_cast %12 : vector<1x1x32xf32> to vector<1x32xf32>
    %14 = vector.broadcast %13 : vector<1x32xf32> to vector<8x32xf32>
    %15 = arith.addf %11, %14 : vector<8x32xf32>
    %c0_16 = arith.constant 0 : index
    %c0_17 = arith.constant 0 : index
    %c0_18 = arith.constant 0 : index
    %16 = vector.load %arg10[%c0_16, %c0_17, %c0_18] : memref<1x32x32xbf16, #tpu.memory_space<vmem>>, vector<1x32x32xbf16>
    %17 = vector.shape_cast %16 : vector<1x32x32xbf16> to vector<32x32xbf16>
    %cst_19 = arith.constant dense<0.000000e+00> : vector<8x32xf32>
    %18 = tpu.matmul %1, %17, %cst_19 {dimension_numbers = #tpu.dot_dimension_numbers<[1], [0], [0], [1], [0, 0, 1, 1], [], []>} : vector<8x32xbf16>, vector<32x32xbf16>, vector<8x32xf32> -> vector<8x32xf32>
    %c0_20 = arith.constant 0 : index
    %c0_21 = arith.constant 0 : index
    %c0_22 = arith.constant 0 : index
    %19 = vector.load %arg11[%c0_20, %c0_21, %c0_22] : memref<1x1x32xf32, #tpu.memory_space<vmem>>, vector<1x1x32xf32>
    %20 = vector.shape_cast %19 : vector<1x1x32xf32> to vector<1x32xf32>
    %21 = vector.broadcast %20 : vector<1x32xf32> to vector<8x32xf32>
    %22 = arith.addf %18, %21 : vector<8x32xf32>
    %23 = arith.truncf %15 : vector<8x32xf32> to vector<8x32xbf16>
    %c0_23 = arith.constant 0 : index
    %c0_24 = arith.constant 0 : index
    %c0_25 = arith.constant 0 : index
    %24 = vector.load %arg12[%c0_23, %c0_24, %c0_25] : memref<1x32x32xbf16, #tpu.memory_space<vmem>>, vector<1x32x32xbf16>
    %25 = vector.shape_cast %24 : vector<1x32x32xbf16> to vector<32x32xbf16>
    %cst_26 = arith.constant dense<0.000000e+00> : vector<8x32xf32>
    %26 = tpu.matmul %23, %25, %cst_26 {dimension_numbers = #tpu.dot_dimension_numbers<[1], [0], [0], [1], [0, 0, 1, 1], [], []>} : vector<8x32xbf16>, vector<32x32xbf16>, vector<8x32xf32> -> vector<8x32xf32>
    %27 = arith.mulf %8, %26 : vector<8x32xf32>
    %28 = arith.truncf %27 : vector<8x32xf32> to vector<8x32xbf16>
    %c0_27 = arith.constant 0 : index
    %c0_28 = arith.constant 0 : index
    %c0_29 = arith.constant 0 : index
    %29 = vector.load %arg14[%c0_27, %c0_28, %c0_29] : memref<1x32x32xbf16, #tpu.memory_space<vmem>>, vector<1x32x32xbf16>
    %30 = vector.shape_cast %29 : vector<1x32x32xbf16> to vector<32x32xbf16>
    %cst_30 = arith.constant dense<0.000000e+00> : vector<8x32xf32>
    %31 = tpu.matmul %28, %30, %cst_30 {dimension_numbers = #tpu.dot_dimension_numbers<[1], [0], [0], [1], [0, 0, 1, 1], [], []>} : vector<8x32xbf16>, vector<32x32xbf16>, vector<8x32xf32> -> vector<8x32xf32>
    %32 = arith.truncf %22 : vector<8x32xf32> to vector<8x32xbf16>
    %c0_31 = arith.constant 0 : index
    %c0_32 = arith.constant 0 : index
    %c0_33 = arith.constant 0 : index
    %33 = vector.load %arg13[%c0_31, %c0_32, %c0_33] : memref<1x32x32xbf16, #tpu.memory_space<vmem>>, vector<1x32x32xbf16>
    %34 = vector.shape_cast %33 : vector<1x32x32xbf16> to vector<32x32xbf16>
    %cst_34 = arith.constant dense<0.000000e+00> : vector<8x32xf32>
    %35 = tpu.matmul %32, %34, %cst_34 {dimension_numbers = #tpu.dot_dimension_numbers<[1], [0], [0], [1], [0, 0, 1, 1], [], []>} : vector<8x32xbf16>, vector<32x32xbf16>, vector<8x32xf32> -> vector<8x32xf32>
    %c0_35 = arith.constant 0 : index
    %c0_36 = arith.constant 0 : index
    %36 = vector.load %arg15[%c0_35, %c0_36] : memref<8x64xf32, #tpu.memory_space<vmem>>, vector<8x32xf32>
    tpu.vector_store %arg15[%c0_35, %c0_36], %35 {strides = array<i32>} : memref<8x64xf32, #tpu.memory_space<vmem>>, vector<8x32xf32>,
    %c0_37 = arith.constant 0 : index
    %c32 = arith.constant 32 : index
    %37 = vector.load %arg15[%c0_37, %c32] : memref<8x64xf32, #tpu.memory_space<vmem>>, vector<8x32xf32>
    tpu.vector_store %arg15[%c0_37, %c32], %31 {strides = array<i32>} : memref<8x64xf32, #tpu.memory_space<vmem>>, vector<8x32xf32>,
    return
  }
  func.func @transform_0(%arg0: i32, %arg1: memref<11xi32, #tpu.memory_space<smem>>, %arg2: memref<11xi32, #tpu.memory_space<smem>>, %arg3: memref<11xi32, #tpu.memory_space<smem>>) -> (i32, i32) {
    %c0_i32 = arith.constant 0 : i32
    %c0_i32_0 = arith.constant 0 : i32
    return %arg0, %c0_i32 : i32, i32
  }
  func.func @transform_1(%arg0: i32, %arg1: memref<11xi32, #tpu.memory_space<smem>>, %arg2: memref<11xi32, #tpu.memory_space<smem>>, %arg3: memref<11xi32, #tpu.memory_space<smem>>) -> (i32, i32) {
    %c0_i32 = arith.constant 0 : i32
    %c0_i32_0 = arith.constant 0 : i32
    return %arg0, %c0_i32 : i32, i32
  }
  func.func @transform_2(%arg0: i32, %arg1: memref<11xi32, #tpu.memory_space<smem>>, %arg2: memref<11xi32, #tpu.memory_space<smem>>, %arg3: memref<11xi32, #tpu.memory_space<smem>>) -> (i32, i32, i32) {
    %0 = arith.index_cast %arg0 : i32 to index
    %1 = memref.load %arg1[%0] : memref<11xi32, #tpu.memory_space<smem>>
    %c0_i32 = arith.constant 0 : i32
    %c0_i32_0 = arith.constant 0 : i32
    %c0_i32_1 = arith.constant 0 : i32
    return %1, %c0_i32, %c0_i32_0 : i32, i32, i32
  }
  func.func @transform_3(%arg0: i32, %arg1: memref<11xi32, #tpu.memory_space<smem>>, %arg2: memref<11xi32, #tpu.memory_space<smem>>, %arg3: memref<11xi32, #tpu.memory_space<smem>>) -> (i32, i32, i32) {
    %0 = arith.index_cast %arg0 : i32 to index
    %1 = memref.load %arg1[%0] : memref<11xi32, #tpu.memory_space<smem>>
    %c0_i32 = arith.constant 0 : i32
    %c0_i32_0 = arith.constant 0 : i32
    %c0_i32_1 = arith.constant 0 : i32
    return %1, %c0_i32, %c0_i32_0 : i32, i32, i32
  }
  func.func @transform_4(%arg0: i32, %arg1: memref<11xi32, #tpu.memory_space<smem>>, %arg2: memref<11xi32, #tpu.memory_space<smem>>, %arg3: memref<11xi32, #tpu.memory_space<smem>>) -> (i32, i32, i32) {
    %0 = arith.index_cast %arg0 : i32 to index
    %1 = memref.load %arg2[%0] : memref<11xi32, #tpu.memory_space<smem>>
    %c0_i32 = arith.constant 0 : i32
    %c0_i32_0 = arith.constant 0 : i32
    %c0_i32_1 = arith.constant 0 : i32
    return %1, %c0_i32, %c0_i32_0 : i32, i32, i32
  }
  func.func @transform_5(%arg0: i32, %arg1: memref<11xi32, #tpu.memory_space<smem>>, %arg2: memref<11xi32, #tpu.memory_space<smem>>, %arg3: memref<11xi32, #tpu.memory_space<smem>>) -> (i32, i32, i32) {
    %0 = arith.index_cast %arg0 : i32 to index
    %1 = memref.load %arg2[%0] : memref<11xi32, #tpu.memory_space<smem>>
    %c0_i32 = arith.constant 0 : i32
    %c0_i32_0 = arith.constant 0 : i32
    %c0_i32_1 = arith.constant 0 : i32
    return %1, %c0_i32, %c0_i32_0 : i32, i32, i32
  }
  func.func @transform_6(%arg0: i32, %arg1: memref<11xi32, #tpu.memory_space<smem>>, %arg2: memref<11xi32, #tpu.memory_space<smem>>, %arg3: memref<11xi32, #tpu.memory_space<smem>>) -> (i32, i32, i32) {
    %0 = arith.index_cast %arg0 : i32 to index
    %1 = memref.load %arg2[%0] : memref<11xi32, #tpu.memory_space<smem>>
    %c0_i32 = arith.constant 0 : i32
    %c0_i32_0 = arith.constant 0 : i32
    %c0_i32_1 = arith.constant 0 : i32
    return %1, %c0_i32, %c0_i32_0 : i32, i32, i32
  }
  func.func @transform_7(%arg0: i32, %arg1: memref<11xi32, #tpu.memory_space<smem>>, %arg2: memref<11xi32, #tpu.memory_space<smem>>, %arg3: memref<11xi32, #tpu.memory_space<smem>>) -> (i32, i32, i32) {
    %0 = arith.index_cast %arg0 : i32 to index
    %1 = memref.load %arg2[%0] : memref<11xi32, #tpu.memory_space<smem>>
    %c0_i32 = arith.constant 0 : i32
    %c0_i32_0 = arith.constant 0 : i32
    %c0_i32_1 = arith.constant 0 : i32
    return %1, %c0_i32, %c0_i32_0 : i32, i32, i32
  }
  func.func @transform_8(%arg0: i32, %arg1: memref<11xi32, #tpu.memory_space<smem>>, %arg2: memref<11xi32, #tpu.memory_space<smem>>, %arg3: memref<11xi32, #tpu.memory_space<smem>>) -> (i32, i32, i32) {
    %0 = arith.index_cast %arg0 : i32 to index
    %1 = memref.load %arg3[%0] : memref<11xi32, #tpu.memory_space<smem>>
    %c0_i32 = arith.constant 0 : i32
    %c0_i32_0 = arith.constant 0 : i32
    %c0_i32_1 = arith.constant 0 : i32
    return %1, %c0_i32, %c0_i32_0 : i32, i32, i32
  }
  func.func @transform_9(%arg0: i32, %arg1: memref<11xi32, #tpu.memory_space<smem>>, %arg2: memref<11xi32, #tpu.memory_space<smem>>, %arg3: memref<11xi32, #tpu.memory_space<smem>>) -> (i32, i32, i32) {
    %0 = arith.index_cast %arg0 : i32 to index
    %1 = memref.load %arg3[%0] : memref<11xi32, #tpu.memory_space<smem>>
    %c0_i32 = arith.constant 0 : i32
    %c0_i32_0 = arith.constant 0 : i32
    %c0_i32_1 = arith.constant 0 : i32
    return %1, %c0_i32, %c0_i32_0 : i32, i32, i32
  }
  func.func @transform_10(%arg0: i32, %arg1: memref<11xi32, #tpu.memory_space<smem>>, %arg2: memref<11xi32, #tpu.memory_space<smem>>, %arg3: memref<11xi32, #tpu.memory_space<smem>>) -> (i32, i32, i32) {
    %0 = arith.index_cast %arg0 : i32 to index
    %1 = memref.load %arg3[%0] : memref<11xi32, #tpu.memory_space<smem>>
    %c0_i32 = arith.constant 0 : i32
    %c0_i32_0 = arith.constant 0 : i32
    %c0_i32_1 = arith.constant 0 : i32
    return %1, %c0_i32, %c0_i32_0 : i32, i32, i32
  }
  func.func @transform_11(%arg0: i32, %arg1: memref<11xi32, #tpu.memory_space<smem>>, %arg2: memref<11xi32, #tpu.memory_space<smem>>, %arg3: memref<11xi32, #tpu.memory_space<smem>>) -> (i32, i32) {
    %c0_i32 = arith.constant 0 : i32
    %c0_i32_0 = arith.constant 0 : i32
    return %arg0, %c0_i32 : i32, i32
  }
}

module attributes {stable_mosaic.version = 11 : i64} {
  func.func @_update_kernel(%arg0: i32, %arg1: memref<4xi32, #tpu.memory_space<smem>>, %arg2: memref<8x32xbf16, #tpu.memory_space<vmem>>, %arg3: memref<8x32xf32, #tpu.memory_space<vmem>>, %arg4: memref<1x32x32xbf16, #tpu.memory_space<vmem>>, %arg5: memref<1x1x32xf32, #tpu.memory_space<vmem>>, %arg6: memref<1x1x1xf32, #tpu.memory_space<vmem>>, %arg7: memref<8x32xf32, #tpu.memory_space<vmem>>) attributes {dimension_semantics = [#tpu.dimension_semantics<parallel>], iteration_bounds = array<i64: 4>, scalar_prefetch = 1 : i64, scratch_operands = 0 : i64, tpu.core_type = #tpu.core_type<tc>, window_params = [{transform_indices = @transform_0, window_bounds = array<i64: 8, 32>}, {transform_indices = @transform_1, window_bounds = array<i64: 8, 32>}, {transform_indices = @transform_2, window_bounds = array<i64: 1, 32, 32>}, {transform_indices = @transform_3, window_bounds = array<i64: 1, 1, 32>}, {transform_indices = @transform_4, window_bounds = array<i64: 1, 1, 1>}, {transform_indices = @transform_5, window_bounds = array<i64: 8, 32>}]} {
    %c0 = arith.constant 0 : index
    %c0_0 = arith.constant 0 : index
    %0 = vector.load %arg2[%c0, %c0_0] : memref<8x32xbf16, #tpu.memory_space<vmem>>, vector<8x32xbf16>
    %c0_1 = arith.constant 0 : index
    %c0_2 = arith.constant 0 : index
    %c0_3 = arith.constant 0 : index
    %1 = vector.load %arg4[%c0_1, %c0_2, %c0_3] : memref<1x32x32xbf16, #tpu.memory_space<vmem>>, vector<1x32x32xbf16>
    %2 = vector.shape_cast %1 : vector<1x32x32xbf16> to vector<32x32xbf16>
    %cst = arith.constant dense<0.000000e+00> : vector<8x32xf32>
    %3 = tpu.matmul %0, %2, %cst {dimension_numbers = #tpu.dot_dimension_numbers<[1], [0], [0], [1], [0, 0, 1, 1], [], []>} : vector<8x32xbf16>, vector<32x32xbf16>, vector<8x32xf32> -> vector<8x32xf32>
    %c0_4 = arith.constant 0 : index
    %c0_5 = arith.constant 0 : index
    %c0_6 = arith.constant 0 : index
    %4 = vector.load %arg5[%c0_4, %c0_5, %c0_6] : memref<1x1x32xf32, #tpu.memory_space<vmem>>, vector<1x1x32xf32>
    %5 = vector.shape_cast %4 : vector<1x1x32xf32> to vector<1x32xf32>
    %6 = vector.broadcast %5 : vector<1x32xf32> to vector<8x32xf32>
    %7 = arith.addf %3, %6 : vector<8x32xf32>
    %c0_7 = arith.constant 0 : index
    %c0_8 = arith.constant 0 : index
    %c0_9 = arith.constant 0 : index
    %8 = vector.load %arg6[%c0_7, %c0_8, %c0_9] : memref<1x1x1xf32, #tpu.memory_space<vmem>>, vector<1x1x1xf32>
    %9 = vector.shape_cast %8 : vector<1x1x1xf32> to vector<1x1xf32>
    %10 = vector.broadcast %9 : vector<1x1xf32> to vector<8x32xf32>
    %11 = arith.mulf %7, %10 : vector<8x32xf32>
    %c0_10 = arith.constant 0 : index
    %c0_11 = arith.constant 0 : index
    %12 = vector.load %arg3[%c0_10, %c0_11] : memref<8x32xf32, #tpu.memory_space<vmem>>, vector<8x32xf32>
    %cst_12 = arith.constant 1.000000e+00 : f32
    %13 = vector.broadcast %cst_12 : f32 to vector<1x1xf32>
    %14 = arith.subf %13, %9 : vector<1x1xf32>
    %15 = vector.broadcast %14 : vector<1x1xf32> to vector<8x32xf32>
    %16 = arith.mulf %12, %15 : vector<8x32xf32>
    %17 = arith.addf %11, %16 : vector<8x32xf32>
    %c0_13 = arith.constant 0 : index
    %c0_14 = arith.constant 0 : index
    %18 = vector.load %arg7[%c0_13, %c0_14] : memref<8x32xf32, #tpu.memory_space<vmem>>, vector<8x32xf32>
    tpu.vector_store %arg7[%c0_13, %c0_14], %17 {strides = array<i32>} : memref<8x32xf32, #tpu.memory_space<vmem>>, vector<8x32xf32>,
    return
  }
  func.func @transform_0(%arg0: i32, %arg1: memref<4xi32, #tpu.memory_space<smem>>) -> (i32, i32) {
    %c0_i32 = arith.constant 0 : i32
    %c0_i32_0 = arith.constant 0 : i32
    return %arg0, %c0_i32 : i32, i32
  }
  func.func @transform_1(%arg0: i32, %arg1: memref<4xi32, #tpu.memory_space<smem>>) -> (i32, i32) {
    %c0_i32 = arith.constant 0 : i32
    %c0_i32_0 = arith.constant 0 : i32
    return %arg0, %c0_i32 : i32, i32
  }
  func.func @transform_2(%arg0: i32, %arg1: memref<4xi32, #tpu.memory_space<smem>>) -> (i32, i32, i32) {
    %0 = arith.index_cast %arg0 : i32 to index
    %1 = memref.load %arg1[%0] : memref<4xi32, #tpu.memory_space<smem>>
    %c0_i32 = arith.constant 0 : i32
    %c0_i32_0 = arith.constant 0 : i32
    %c0_i32_1 = arith.constant 0 : i32
    return %1, %c0_i32, %c0_i32_0 : i32, i32, i32
  }
  func.func @transform_3(%arg0: i32, %arg1: memref<4xi32, #tpu.memory_space<smem>>) -> (i32, i32, i32) {
    %0 = arith.index_cast %arg0 : i32 to index
    %1 = memref.load %arg1[%0] : memref<4xi32, #tpu.memory_space<smem>>
    %c0_i32 = arith.constant 0 : i32
    %c0_i32_0 = arith.constant 0 : i32
    %c0_i32_1 = arith.constant 0 : i32
    return %1, %c0_i32, %c0_i32_0 : i32, i32, i32
  }
  func.func @transform_4(%arg0: i32, %arg1: memref<4xi32, #tpu.memory_space<smem>>) -> (i32, i32, i32) {
    %0 = arith.index_cast %arg0 : i32 to index
    %1 = memref.load %arg1[%0] : memref<4xi32, #tpu.memory_space<smem>>
    %c0_i32 = arith.constant 0 : i32
    %c0_i32_0 = arith.constant 0 : i32
    %c0_i32_1 = arith.constant 0 : i32
    return %1, %c0_i32, %c0_i32_0 : i32, i32, i32
  }
  func.func @transform_5(%arg0: i32, %arg1: memref<4xi32, #tpu.memory_space<smem>>) -> (i32, i32) {
    %c0_i32 = arith.constant 0 : i32
    %c0_i32_0 = arith.constant 0 : i32
    return %arg0, %c0_i32 : i32, i32
  }
}

</mosaic_0001>

<llo_original>
// kernel: custom-call.2
$region0: #{custom-call.2}
  %s0 = inlined_call_operand.vmem [shape: u32[11], index: 0, kind: output, shape index: {}]

// kernel: custom-call
$region0: #{custom-call}
  %s0 = inlined_call_operand.vmem [shape: u32[4], index: 0, kind: output, shape index: {}]

// kernel: _lambda_.5
$region0: #{_lambda_.5}
  #allocation0 [shape = 'u32[]', space=smem, size = 0x4, offset = 0x4, fixed_abs, tag = 'smem constant byte address 0x4 - core index']
  #allocation1 [shape = 'u32[144,128]{1,0:T(1,128)}', space=vmem, size = 0x12000, scoped, tag = 'internal scratch']
  #allocation2 [shape = 's32[1]{0}', space=sflag, size = 0x4, scoped, tag = 'scoped memory for _lambda_.5']
  #allocation3 [shape = 'u8[512]{0}', space=smem, size = 0x200, scoped, tag = 'prefetched SMEM operand 0']
  %s0 = inlined_call_operand.vmem [shape: s32[4], index: 0, kind: input, shape index: {}]
  %s1 = inlined_call_operand.vmem [shape: bf16[32,16], index: 1, kind: input, shape index: {}]
  %s2 = inlined_call_operand.vmem [shape: bf16[2,16,32], index: 2, kind: input, shape index: {}]
  %s3 = inlined_call_operand.vmem [shape: f32[2,1,32], index: 3, kind: input, shape index: {}]
  %s4 = inlined_call_operand.vmem [shape: f32[32,32], index: 4, kind: output, shape index: {}]
  %s5 = sld [smem:[#allocation0]]
  $region45: #{_lambda_.5} parent=0
    _
  %s7 = ssub.s32 1, %s5
  %s8 = scalar_select 0, %s7, %s5
  %s9 = sshll.u32 %s0, 4
  %s10 = int_to_ptr.vmem [resolvable:$true] %s9
  %12 = dma.vmem_to_smem %s10, 16, [#allocation3], [#allocation2]
  %13 = dma.done [#allocation2], 16
  %14 = sfence
  loop: start=0, step=1, limit=6
  $region2: #{_lambda_.5} parent=0 // loop_pre_header
    _
  $region3: #{_lambda_.5} parent=0 // loop_header
    %s16 = sphi 0, %s20
    %p17 = scmp.ge.s32.totalorder %s16, 6
    %s26 = sphi 0, %s28
    %s29 = sphi 0, %s26
    %s30 = sphi 0, %s29
    %s46 = sphi 0, %s30
    %s54 = sphi 0, %s56
    %s57 = sphi 0, %s54
    %s58 = sphi 0, %s57
    %s74 = sphi 0, %s58
    %s82 = sphi 0, %s84
    %s85 = sphi 0, %s82
    %s86 = sphi 0, %s85
    %s102 = sphi 0, %s86
    %s108 = sphi 0, %s110
    %s111 = sphi 0, %s108
    %s112 = sphi 0, %s111
    %s128 = sphi 0, %s112
  $region4: #{_lambda_.5} parent=0 // loop_header_branch
    %19 = sbr.rel (%p17) target = $region8
  $region5: #{_lambda_.5} parent=0 // loop_body
    %s21 = ssub.s32 %s16, 1
    %s22 = ssub.s32 %s16, 2
    %s23 = sadd.s32 %s16, 1
    %s24 = ssub.s32 %s16, %s23
    %p25 = scmp.eq.s32.totalorder %s24, 0
    %s27 = sadd.s32 %s26, 1
    %s28 = scalar_select %p25, %s26, %s27
    %p31 = pneg %p25
    %p32 = scmp.eq.s32.totalorder %s16, 3
    %p33 = por %p31, %p32
    %p34 = scmp.ne.s32.totalorder %s26, %s29
    %p35 = scmp.eq.s32.totalorder %s16, 0
    %p36 = por %p34, %p35
    %p37 = scmp.ne.s32.totalorder %s26, %s29
    %p38 = scmp.eq.s32.totalorder %s21, 3
    %p39 = por %p37, %p38
    %p40 = scmp.ne.s32.totalorder %s29, %s30
    %p41 = scmp.eq.s32.totalorder %s21, 0
    %p42 = por %p40, %p41
    %p43 = scmp.ne.s32.totalorder %s29, %s30
    %p44 = scmp.eq.s32.totalorder %s22, 3
    %p45 = por %p43, %p44
    %p47 = scmp.ne.s32.totalorder %s30, %s46
    %p48 = scmp.eq.s32.totalorder %s22, 0
    %p49 = por %p47, %p48
    %s50 = sld [smem:[#allocation3 + %s16]]
    %s51 = sld [smem:[#allocation3 + %s23]]
    %s52 = ssub.s32 %s50, %s51
    %p53 = scmp.eq.s32.totalorder %s52, 0
    %s55 = sadd.s32 %s54, 1
    %s56 = scalar_select %p53, %s54, %s55
    %p59 = pneg %p53
    %p60 = scmp.eq.s32.totalorder %s16, 3
    %p61 = por %p59, %p60
    %p62 = scmp.ne.s32.totalorder %s54, %s57
    %p63 = scmp.eq.s32.totalorder %s16, 0
    %p64 = por %p62, %p63
    %p65 = scmp.ne.s32.totalorder %s54, %s57
    %p66 = scmp.eq.s32.totalorder %s21, 3
    %p67 = por %p65, %p66
    %p68 = scmp.ne.s32.totalorder %s57, %s58
    %p69 = scmp.eq.s32.totalorder %s21, 0
    %p70 = por %p68, %p69
    %p71 = scmp.ne.s32.totalorder %s57, %s58
    %p72 = scmp.eq.s32.totalorder %s22, 3
    %p73 = por %p71, %p72
    %p75 = scmp.ne.s32.totalorder %s58, %s74
    %p76 = scmp.eq.s32.totalorder %s22, 0
    %p77 = por %p75, %p76
    %s78 = sld [smem:[#allocation3 + %s16]]
    %s79 = sld [smem:[#allocation3 + %s23]]
    %s80 = ssub.s32 %s78, %s79
    %p81 = scmp.eq.s32.totalorder %s80, 0
    %s83 = sadd.s32 %s82, 1
    %s84 = scalar_select %p81, %s82, %s83
    %p87 = pneg %p81
    %p88 = scmp.eq.s32.totalorder %s16, 3
    %p89 = por %p87, %p88
    %p90 = scmp.ne.s32.totalorder %s82, %s85
    %p91 = scmp.eq.s32.totalorder %s16, 0
    %p92 = por %p90, %p91
    %p93 = scmp.ne.s32.totalorder %s82, %s85
    %p94 = scmp.eq.s32.totalorder %s21, 3
    %p95 = por %p93, %p94
    %p96 = scmp.ne.s32.totalorder %s85, %s86
    %p97 = scmp.eq.s32.totalorder %s21, 0
    %p98 = por %p96, %p97
    %p99 = scmp.ne.s32.totalorder %s85, %s86
    %p100 = scmp.eq.s32.totalorder %s22, 3
    %p101 = por %p99, %p100
    %p103 = scmp.ne.s32.totalorder %s86, %s102
    %p104 = scmp.eq.s32.totalorder %s22, 0
    %p105 = por %p103, %p104
    %s106 = ssub.s32 %s16, %s23
    %p107 = scmp.eq.s32.totalorder %s106, 0
    %s109 = sadd.s32 %s108, 1
    %s110 = scalar_select %p107, %s108, %s109
    %p113 = pneg %p107
    %p114 = scmp.eq.s32.totalorder %s16, 3
    %p115 = por %p113, %p114
    %p116 = scmp.ne.s32.totalorder %s108, %s111
    %p117 = scmp.eq.s32.totalorder %s16, 0
    %p118 = por %p116, %p117
    %p119 = scmp.ne.s32.totalorder %s108, %s111
    %p120 = scmp.eq.s32.totalorder %s21, 3
    %p121 = por %p119, %p120
    %p122 = scmp.ne.s32.totalorder %s111, %s112
    %p123 = scmp.eq.s32.totalorder %s21, 0
    %p124 = por %p122, %p123
    %p125 = scmp.ne.s32.totalorder %s111, %s112
    %p126 = scmp.eq.s32.totalorder %s22, 3
    %p127 = por %p125, %p126
    %p129 = scmp.ne.s32.totalorder %s112, %s128
    %p130 = scmp.eq.s32.totalorder %s22, 0
    %p131 = por %p129, %p130
    %p132 = scmp.le.s32.totalorder 1, %s16
    %p133 = scmp.lt.s32.totalorder %s16, 5
    %p134 = pnand %p132, %p133
    %p135 = pneg %p134
    // Predicated region
    $region9: #{_lambda_.5} parent=5 // pred_check
      _
    $region10: #{_lambda_.5} parent=5 // pred_check_branch
      %137 = sbr.rel (%p134) target = $region12
    $region11: #{_lambda_.5} parent=5 // pred_region
      %s138 = ssub.s32 %s16, 1
    $region12: #{_lambda_.5} parent=5 // pred_fallthru
      _
    %p139 = scmp.lt.s32.totalorder %s16, 4
    // Predicated region
    $region13: #{_lambda_.5} parent=5 // pred_check
      %p140 = pneg %p139
    $region14: #{_lambda_.5} parent=5 // pred_check_branch
      %142 = sbr.rel (%p140) target = $region16
    $region15: #{_lambda_.5} parent=5 // pred_region
      // Predicated region
      $region17: #{_lambda_.5} parent=15 // pred_check
        %p143 = pneg %p36
      $region18: #{_lambda_.5} parent=15 // pred_check_branch
        %145 = sbr.rel (%p143) target = $region20
      $region19: #{_lambda_.5} parent=15 // pred_region
        %p146 = scmp.lt.s32.totalorder %s16, 3
        %s147 = scalar_select %p146, %s16, 3
        %s148 = smul.addr %s147, 4
        %s149 = scalar_lea.vmem %s1, %s148
      $region20: #{_lambda_.5} parent=15 // pred_fallthru
        _
      // Predicated region
      $region21: #{_lambda_.5} parent=15 // pred_check
        %p150 = pneg %p64
      $region22: #{_lambda_.5} parent=15 // pred_check_branch
        %152 = sbr.rel (%p150) target = $region24
      $region23: #{_lambda_.5} parent=15 // pred_region
        %s153 = sld [smem:[#allocation3 + %s16]]
        %p154 = scmp.lt.s32.totalorder %s153, 1
        %s155 = scalar_select %p154, %s153, 1
        %s156 = smul.addr %s155, 2
        %s157 = smul.addr %s156, 4
        %s158 = scalar_lea.vmem %s2, %s157
        %s159 = sld [smem:[#allocation3 + %s16]]
      $region24: #{_lambda_.5} parent=15 // pred_fallthru
        _
      // Predicated region
      $region25: #{_lambda_.5} parent=15 // pred_check
        %p160 = pneg %p92
      $region26: #{_lambda_.5} parent=15 // pred_check_branch
        %162 = sbr.rel (%p160) target = $region28
      $region27: #{_lambda_.5} parent=15 // pred_region
        %s163 = sld [smem:[#allocation3 + %s16]]
        %p164 = scmp.lt.s32.totalorder %s163, 1
        %s165 = scalar_select %p164, %s163, 1
        %s166 = scalar_lea.vmem %s3, %s165
        %s167 = sld [smem:[#allocation3 + %s16]]
      $region28: #{_lambda_.5} parent=15 // pred_fallthru
        _
    $region16: #{_lambda_.5} parent=5 // pred_fallthru
      _
    %p168 = scmp.le.s32.totalorder 1, %s16
    %p169 = scmp.lt.s32.totalorder %s16, 5
    %p170 = pnand %p168, %p169
    %p171 = pneg %p170
    // Predicated region
    $region29: #{_lambda_.5} parent=5 // pred_check
      _
    $region30: #{_lambda_.5} parent=5 // pred_check_branch
      %173 = sbr.rel (%p170) target = $region32
    $region31: #{_lambda_.5} parent=5 // pred_region
      %s174 = ssub.s32 %s16, 1
      %p175 = scmp.lt.s32.totalorder %s21, 3
      %s176 = scalar_select %p175, %s21, 3
      %s177 = smul.addr %s176, 4
      %s178 = scalar_lea.vmem %s1, %s177
      %p179 = pneg %p42
      %p180 = pneg %p39
      %s181 = sld [smem:[#allocation3 + %s21]]
      %p182 = scmp.lt.s32.totalorder %s181, 1
      %s183 = scalar_select %p182, %s181, 1
      %s184 = smul.addr %s183, 2
      %s185 = smul.addr %s184, 4
      %s186 = scalar_lea.vmem %s2, %s185
      %p187 = pneg %p70
      %p188 = pneg %p67
      %s189 = sld [smem:[#allocation3 + %s21]]
      %p190 = scmp.lt.s32.totalorder %s189, 1
      %s191 = scalar_select %p190, %s189, 1
      %s192 = scalar_lea.vmem %s3, %s191
      %p193 = pneg %p98
      %p194 = pneg %p95
      %p195 = pneg %p124
      %p196 = pneg %p121
      %p197 = scmp.lt.s32.totalorder %s21, 3
      %s198 = scalar_select %p197, %s21, 3
      %s199 = smul.addr %s198, 8
      %s200 = scalar_lea.vmem %s4, %s199
      %p201 = scmp.lt.s32.totalorder %s21, 3
      %s202 = scalar_select %p201, %s21, 3
      %s203 = smul.addr %s202, 4
      %s204 = scalar_lea.vmem %s1, %s203
      %s205 = sld [smem:[#allocation3 + %s21]]
      %p206 = scmp.lt.s32.totalorder %s205, 1
      %s207 = scalar_select %p206, %s205, 1
      %s208 = smul.addr %s207, 2
      %s209 = smul.addr %s208, 4
      %s210 = scalar_lea.vmem %s2, %s209
      %s211 = sld [smem:[#allocation3 + %s21]]
      %s212 = sld [smem:[#allocation3 + %s21]]
      %p213 = scmp.lt.s32.totalorder %s212, 1
      %s214 = scalar_select %p213, %s212, 1
      %s215 = scalar_lea.vmem %s3, %s214
      %s216 = sld [smem:[#allocation3 + %s21]]
      %p217 = scmp.lt.s32.totalorder %s21, 3
      %s218 = scalar_select %p217, %s21, 3
      %s219 = smul.addr %s218, 8
      %s220 = scalar_lea.vmem %s4, %s219
      %v222 = vld [vmem:[%s204] sm:$0xf]
      %v223 = vld [vmem:[%s210] sm:$0xf]
      %v224 = vld [vmem:[%s210 + $0x4] sm:$0xf]
      %v225 = vld [vmem:[%s215] sm:$0x1]
      %v227 = vlaneseq
      %v228 = vshrl.u32 %v227, 7
      %v229 = vsub.s32 0, %v228
      %v230 = vrot.slane %v225, %v229
      %v234 = vunpack.c.l.b16 %v223
      %v235 = vunpack.c.l.b16 %v224
      %v236 = vpack.c.b16 %v235, %v234
      %vm238 = vcmask 130048
      %v240 = vsel %vm238, %v222, 0
      %242 = vmatprep.subr.bf16.mxu0 0
      %243 = vmatpush1.bf16.msra.mxu0 0
      %244 = vmatprep.subr.bf16.mxu0 0
      %245 = vmatpush1.bf16.msra.mxu0 0
      %246 = vmatprep.subr.bf16.mxu0 0
      %247 = vmatpush1.bf16.msra.mxu0 0
      %248 = vmatprep.subr.bf16.mxu0 0
      %249 = vmatpush1.bf16.msra.mxu0 0
      %250 = vmatprep.subr.bf16.mxu0 0
      %251 = vmatpush1.bf16.msra.mxu0 0
      %252 = vmatprep.subr.bf16.mxu0 0
      %253 = vmatpush1.bf16.msra.mxu0 0
      %254 = vmatprep.subr.bf16.mxu0 0
      %255 = vmatpush1.bf16.msra.mxu0 0
      %256 = vmatprep.subr.bf16.mxu0 0
      %257 = vmatpush1.bf16.msra.mxu0 %v236
      %258 = vmatprep.subr.bf16.mxu0 0
      %259 = vmatpush2.bf16.msra.mxu0 0
      %260 = vmatprep.subr.bf16.mxu0 0
      %261 = vmatpush2.bf16.msra.mxu0 0
      %262 = vmatprep.subr.bf16.mxu0 0
      %263 = vmatpush2.bf16.msra.mxu0 0
      %264 = vmatprep.subr.bf16.mxu0 0
      %265 = vmatpush2.bf16.msra.mxu0 0
      %266 = vmatprep.subr.bf16.mxu0 0
      %267 = vmatpush2.bf16.msra.mxu0 0
      %268 = vmatprep.subr.bf16.mxu0 0
      %269 = vmatpush2.bf16.msra.mxu0 0
      %270 = vmatprep.subr.bf16.mxu0 0
      %271 = vmatpush2.bf16.msra.mxu0 0
      %272 = vmatprep.subr.bf16.mxu0 0
      %273 = vmatpush2.bf16.msra.mxu0 0
      %274 = vmatprep.mubr.bf16.mxu0 0
      %275 = vmatmul.mubr.bf16.gmra.mxu0 %v240
      %v276 = vpop.f32.mrf.mxu0
      %v277 = vadd.f32 %v230, %v276
      %v278 = vpop.f32.mrf.mxu0
      %v279 = vpop.f32.mrf.mxu0
      %v280 = vpop.f32.mrf.mxu0
      %281 = vdwg.mxu0
      %v282 = vtanh.pop %v277
      %vm283 = vcmask 261120
      %284 = vst.msk [vmem:[%s220] sm:$0xff] %vm283, %v282
      %p285 = scmp.lt.s32.totalorder %s21, 3
      %s286 = scalar_select %p285, %s21, 3
      %s287 = smul.addr %s286, 8
      %s288 = scalar_lea.vmem %s4, %s287
      // Predicated region
      $region33: #{_lambda_.5} parent=31 // pred_check
        %p289 = pneg %p121
      $region34: #{_lambda_.5} parent=31 // pred_check_branch
        %291 = sbr.rel (%p289) target = $region36
      $region35: #{_lambda_.5} parent=31 // pred_region
        _
      $region36: #{_lambda_.5} parent=31 // pred_fallthru
        _
    $region32: #{_lambda_.5} parent=5 // pred_fallthru
      _
    %p292 = scmp.le.s32.totalorder 2, %s16
    // Predicated region
    $region37: #{_lambda_.5} parent=5 // pred_check
      %p293 = pneg %p292
    $region38: #{_lambda_.5} parent=5 // pred_check_branch
      %295 = sbr.rel (%p293) target = $region40
    $region39: #{_lambda_.5} parent=5 // pred_region
      %s296 = ssub.s32 %s16, 2
      // Predicated region
      $region41: #{_lambda_.5} parent=39 // pred_check
        %p297 = pneg %p127
      $region42: #{_lambda_.5} parent=39 // pred_check_branch
        %299 = sbr.rel (%p297) target = $region44
      $region43: #{_lambda_.5} parent=39 // pred_region
        %p300 = scmp.lt.s32.totalorder %s22, 3
        %s301 = scalar_select %p300, %s22, 3
        %s302 = smul.addr %s301, 8
        %s303 = scalar_lea.vmem %s4, %s302
      $region44: #{_lambda_.5} parent=39 // pred_fallthru
        _
    $region40: #{_lambda_.5} parent=5 // pred_fallthru
      _
  $region6: #{_lambda_.5} parent=0 // loop_footer
    %s20 = sadd.s32 1, %s16
  $region7: #{_lambda_.5} parent=0 // loop_footer_branch
    %15 = sbr.rel target = $region3
  $region8: #{_lambda_.5} parent=0 // loop_exit
    _

// kernel: _lambda_.6
$region0: #{_lambda_.6}
  #allocation0 [shape = 'u32[]', space=smem, size = 0x4, offset = 0x4, fixed_abs, tag = 'smem constant byte address 0x4 - core index']
  #allocation1 [shape = 'u32[144,128]{1,0:T(1,128)}', space=vmem, size = 0x12000, scoped, tag = 'internal scratch']
  #allocation2 [shape = 's32[1]{0}', space=sflag, size = 0x4, scoped, tag = 'scoped memory for _lambda_.6']
  #allocation3 [shape = 'u8[512]{0}', space=smem, size = 0x200, scoped, tag = 'prefetched SMEM operand 0']
  #allocation4 [shape = 'u8[512]{0}', space=smem, size = 0x200, scoped, tag = 'prefetched SMEM operand 1']
  #allocation5 [shape = 'u8[512]{0}', space=smem, size = 0x200, scoped, tag = 'prefetched SMEM operand 2']
  %s0 = inlined_call_operand.vmem [shape: s32[11], index: 0, kind: input, shape index: {}]
  %s1 = inlined_call_operand.vmem [shape: s32[11], index: 1, kind: input, shape index: {}]
  %s2 = inlined_call_operand.vmem [shape: s32[11], index: 2, kind: input, shape index: {}]
  %s3 = inlined_call_operand.vmem [shape: bf16[88,32], index: 3, kind: input, shape index: {}]
  %s4 = inlined_call_operand.vmem [shape: bf16[88,32], index: 4, kind: input, shape index: {}]
  %s5 = inlined_call_operand.vmem [shape: bf16[2,32,32], index: 5, kind: input, shape index: {}]
  %s6 = inlined_call_operand.vmem [shape: f32[2,1,32], index: 6, kind: input, shape index: {}]
  %s7 = inlined_call_operand.vmem [shape: bf16[2,32,32], index: 7, kind: input, shape index: {}]
  %s8 = inlined_call_operand.vmem [shape: f32[2,1,32], index: 8, kind: input, shape index: {}]
  %s9 = inlined_call_operand.vmem [shape: bf16[2,32,32], index: 9, kind: input, shape index: {}]
  %s10 = inlined_call_operand.vmem [shape: f32[2,1,32], index: 10, kind: input, shape index: {}]
  %s11 = inlined_call_operand.vmem [shape: bf16[2,32,32], index: 11, kind: input, shape index: {}]
  %s12 = inlined_call_operand.vmem [shape: bf16[2,32,32], index: 12, kind: input, shape index: {}]
  %s13 = inlined_call_operand.vmem [shape: bf16[2,32,32], index: 13, kind: input, shape index: {}]
  %s14 = inlined_call_operand.vmem [shape: f32[88,64], index: 14, kind: output, shape index: {}]
  %s15 = sld [smem:[#allocation0]]
  $region77: #{_lambda_.6} parent=0
    _
  %s17 = ssub.s32 1, %s15
  %s18 = scalar_select 0, %s17, %s15
  %s19 = sshll.u32 %s0, 4
  %s20 = int_to_ptr.vmem [resolvable:$true] %s19
  %22 = dma.vmem_to_smem %s20, 16, [#allocation3], [#allocation2]
  %s23 = sshll.u32 %s1, 4
  %s24 = int_to_ptr.vmem [resolvable:$true] %s23
  %26 = dma.vmem_to_smem %s24, 16, [#allocation4], [#allocation2]
  %s27 = sshll.u32 %s2, 4
  %s28 = int_to_ptr.vmem [resolvable:$true] %s27
  %30 = dma.vmem_to_smem %s28, 16, [#allocation5], [#allocation2]
  %31 = dma.done [#allocation2], 48
  %32 = sfence
  loop: start=0, step=1, limit=13
  $region2: #{_lambda_.6} parent=0 // loop_pre_header
    _
  $region3: #{_lambda_.6} parent=0 // loop_header
    %s34 = sphi 0, %s38
    %p35 = scmp.ge.s32.totalorder %s34, 13
    %s44 = sphi 0, %s46
    %s47 = sphi 0, %s44
    %s48 = sphi 0, %s47
    %s64 = sphi 0, %s48
    %s70 = sphi 0, %s72
    %s73 = sphi 0, %s70
    %s74 = sphi 0, %s73
    %s90 = sphi 0, %s74
    %s98 = sphi 0, %s100
    %s101 = sphi 0, %s98
    %s102 = sphi 0, %s101
    %s118 = sphi 0, %s102
    %s126 = sphi 0, %s128
    %s129 = sphi 0, %s126
    %s130 = sphi 0, %s129
    %s146 = sphi 0, %s130
    %s154 = sphi 0, %s156
    %s157 = sphi 0, %s154
    %s158 = sphi 0, %s157
    %s174 = sphi 0, %s158
    %s182 = sphi 0, %s184
    %s185 = sphi 0, %s182
    %s186 = sphi 0, %s185
    %s202 = sphi 0, %s186
    %s210 = sphi 0, %s212
    %s213 = sphi 0, %s210
    %s214 = sphi 0, %s213
    %s230 = sphi 0, %s214
    %s238 = sphi 0, %s240
    %s241 = sphi 0, %s238
    %s242 = sphi 0, %s241
    %s258 = sphi 0, %s242
    %s266 = sphi 0, %s268
    %s269 = sphi 0, %s266
    %s270 = sphi 0, %s269
    %s286 = sphi 0, %s270
    %s294 = sphi 0, %s296
    %s297 = sphi 0, %s294
    %s298 = sphi 0, %s297
    %s314 = sphi 0, %s298
    %s322 = sphi 0, %s324
    %s325 = sphi 0, %s322
    %s326 = sphi 0, %s325
    %s342 = sphi 0, %s326
    %s348 = sphi 0, %s350
    %s351 = sphi 0, %s348
    %s352 = sphi 0, %s351
    %s368 = sphi 0, %s352
  $region4: #{_lambda_.6} parent=0 // loop_header_branch
    %37 = sbr.rel (%p35) target = $region8
  $region5: #{_lambda_.6} parent=0 // loop_body
    %s39 = ssub.s32 %s34, 1
    %s40 = ssub.s32 %s34, 2
    %s41 = sadd.s32 %s34, 1
    %s42 = ssub.s32 %s34, %s41
    %p43 = scmp.eq.s32.totalorder %s42, 0
    %s45 = sadd.s32 %s44, 1
    %s46 = scalar_select %p43, %s44, %s45
    %p49 = pneg %p43
    %p50 = scmp.eq.s32.totalorder %s34, 10
    %p51 = por %p49, %p50
    %p52 = scmp.ne.s32.totalorder %s44, %s47
    %p53 = scmp.eq.s32.totalorder %s34, 0
    %p54 = por %p52, %p53
    %p55 = scmp.ne.s32.totalorder %s44, %s47
    %p56 = scmp.eq.s32.totalorder %s39, 10
    %p57 = por %p55, %p56
    %p58 = scmp.ne.s32.totalorder %s47, %s48
    %p59 = scmp.eq.s32.totalorder %s39, 0
    %p60 = por %p58, %p59
    %p61 = scmp.ne.s32.totalorder %s47, %s48
    %p62 = scmp.eq.s32.totalorder %s40, 10
    %p63 = por %p61, %p62
    %p65 = scmp.ne.s32.totalorder %s48, %s64
    %p66 = scmp.eq.s32.totalorder %s40, 0
    %p67 = por %p65, %p66
    %s68 = ssub.s32 %s34, %s41
    %p69 = scmp.eq.s32.totalorder %s68, 0
    %s71 = sadd.s32 %s70, 1
    %s72 = scalar_select %p69, %s70, %s71
    %p75 = pneg %p69
    %p76 = scmp.eq.s32.totalorder %s34, 10
    %p77 = por %p75, %p76
    %p78 = scmp.ne.s32.totalorder %s70, %s73
    %p79 = scmp.eq.s32.totalorder %s34, 0
    %p80 = por %p78, %p79
    %p81 = scmp.ne.s32.totalorder %s70, %s73
    %p82 = scmp.eq.s32.totalorder %s39, 10
    %p83 = por %p81, %p82
    %p84 = scmp.ne.s32.totalorder %s73, %s74
    %p85 = scmp.eq.s32.totalorder %s39, 0
    %p86 = por %p84, %p85
    %p87 = scmp.ne.s32.totalorder %s73, %s74
    %p88 = scmp.eq.s32.totalorder %s40, 10
    %p89 = por %p87, %p88
    %p91 = scmp.ne.s32.totalorder %s74, %s90
    %p92 = scmp.eq.s32.totalorder %s40, 0
    %p93 = por %p91, %p92
    %s94 = sld [smem:[#allocation3 + %s34]]
    %s95 = sld [smem:[#allocation3 + %s41]]
    %s96 = ssub.s32 %s94, %s95
    %p97 = scmp.eq.s32.totalorder %s96, 0
    %s99 = sadd.s32 %s98, 1
    %s100 = scalar_select %p97, %s98, %s99
    %p103 = pneg %p97
    %p104 = scmp.eq.s32.totalorder %s34, 10
    %p105 = por %p103, %p104
    %p106 = scmp.ne.s32.totalorder %s98, %s101
    %p107 = scmp.eq.s32.totalorder %s34, 0
    %p108 = por %p106, %p107
    %p109 = scmp.ne.s32.totalorder %s98, %s101
    %p110 = scmp.eq.s32.totalorder %s39, 10
    %p111 = por %p109, %p110
    %p112 = scmp.ne.s32.totalorder %s101, %s102
    %p113 = scmp.eq.s32.totalorder %s39, 0
    %p114 = por %p112, %p113
    %p115 = scmp.ne.s32.totalorder %s101, %s102
    %p116 = scmp.eq.s32.totalorder %s40, 10
    %p117 = por %p115, %p116
    %p119 = scmp.ne.s32.totalorder %s102, %s118
    %p120 = scmp.eq.s32.totalorder %s40, 0
    %p121 = por %p119, %p120
    %s122 = sld [smem:[#allocation3 + %s34]]
    %s123 = sld [smem:[#allocation3 + %s41]]
    %s124 = ssub.s32 %s122, %s123
    %p125 = scmp.eq.s32.totalorder %s124, 0
    %s127 = sadd.s32 %s126, 1
    %s128 = scalar_select %p125, %s126, %s127
    %p131 = pneg %p125
    %p132 = scmp.eq.s32.totalorder %s34, 10
    %p133 = por %p131, %p132
    %p134 = scmp.ne.s32.totalorder %s126, %s129
    %p135 = scmp.eq.s32.totalorder %s34, 0
    %p136 = por %p134, %p135
    %p137 = scmp.ne.s32.totalorder %s126, %s129
    %p138 = scmp.eq.s32.totalorder %s39, 10
    %p139 = por %p137, %p138
    %p140 = scmp.ne.s32.totalorder %s129, %s130
    %p141 = scmp.eq.s32.totalorder %s39, 0
    %p142 = por %p140, %p141
    %p143 = scmp.ne.s32.totalorder %s129, %s130
    %p144 = scmp.eq.s32.totalorder %s40, 10
    %p145 = por %p143, %p144
    %p147 = scmp.ne.s32.totalorder %s130, %s146
    %p148 = scmp.eq.s32.totalorder %s40, 0
    %p149 = por %p147, %p148
    %s150 = sld [smem:[#allocation4 + %s34]]
    %s151 = sld [smem:[#allocation4 + %s41]]
    %s152 = ssub.s32 %s150, %s151
    %p153 = scmp.eq.s32.totalorder %s152, 0
    %s155 = sadd.s32 %s154, 1
    %s156 = scalar_select %p153, %s154, %s155
    %p159 = pneg %p153
    %p160 = scmp.eq.s32.totalorder %s34, 10
    %p161 = por %p159, %p160
    %p162 = scmp.ne.s32.totalorder %s154, %s157
    %p163 = scmp.eq.s32.totalorder %s34, 0
    %p164 = por %p162, %p163
    %p165 = scmp.ne.s32.totalorder %s154, %s157
    %p166 = scmp.eq.s32.totalorder %s39, 10
    %p167 = por %p165, %p166
    %p168 = scmp.ne.s32.totalorder %s157, %s158
    %p169 = scmp.eq.s32.totalorder %s39, 0
    %p170 = por %p168, %p169
    %p171 = scmp.ne.s32.totalorder %s157, %s158
    %p172 = scmp.eq.s32.totalorder %s40, 10
    %p173 = por %p171, %p172
    %p175 = scmp.ne.s32.totalorder %s158, %s174
    %p176 = scmp.eq.s32.totalorder %s40, 0
    %p177 = por %p175, %p176
    %s178 = sld [smem:[#allocation4 + %s34]]
    %s179 = sld [smem:[#allocation4 + %s41]]
    %s180 = ssub.s32 %s178, %s179
    %p181 = scmp.eq.s32.totalorder %s180, 0
    %s183 = sadd.s32 %s182, 1
    %s184 = scalar_select %p181, %s182, %s183
    %p187 = pneg %p181
    %p188 = scmp.eq.s32.totalorder %s34, 10
    %p189 = por %p187, %p188
    %p190 = scmp.ne.s32.totalorder %s182, %s185
    %p191 = scmp.eq.s32.totalorder %s34, 0
    %p192 = por %p190, %p191
    %p193 = scmp.ne.s32.totalorder %s182, %s185
    %p194 = scmp.eq.s32.totalorder %s39, 10
    %p195 = por %p193, %p194
    %p196 = scmp.ne.s32.totalorder %s185, %s186
    %p197 = scmp.eq.s32.totalorder %s39, 0
    %p198 = por %p196, %p197
    %p199 = scmp.ne.s32.totalorder %s185, %s186
    %p200 = scmp.eq.s32.totalorder %s40, 10
    %p201 = por %p199, %p200
    %p203 = scmp.ne.s32.totalorder %s186, %s202
    %p204 = scmp.eq.s32.totalorder %s40, 0
    %p205 = por %p203, %p204
    %s206 = sld [smem:[#allocation4 + %s34]]
    %s207 = sld [smem:[#allocation4 + %s41]]
    %s208 = ssub.s32 %s206, %s207
    %p209 = scmp.eq.s32.totalorder %s208, 0
    %s211 = sadd.s32 %s210, 1
    %s212 = scalar_select %p209, %s210, %s211
    %p215 = pneg %p209
    %p216 = scmp.eq.s32.totalorder %s34, 10
    %p217 = por %p215, %p216
    %p218 = scmp.ne.s32.totalorder %s210, %s213
    %p219 = scmp.eq.s32.totalorder %s34, 0
    %p220 = por %p218, %p219
    %p221 = scmp.ne.s32.totalorder %s210, %s213
    %p222 = scmp.eq.s32.totalorder %s39, 10
    %p223 = por %p221, %p222
    %p224 = scmp.ne.s32.totalorder %s213, %s214
    %p225 = scmp.eq.s32.totalorder %s39, 0
    %p226 = por %p224, %p225
    %p227 = scmp.ne.s32.totalorder %s213, %s214
    %p228 = scmp.eq.s32.totalorder %s40, 10
    %p229 = por %p227, %p228
    %p231 = scmp.ne.s32.totalorder %s214, %s230
    %p232 = scmp.eq.s32.totalorder %s40, 0
    %p233 = por %p231, %p232
    %s234 = sld [smem:[#allocation4 + %s34]]
    %s235 = sld [smem:[#allocation4 + %s41]]
    %s236 = ssub.s32 %s234, %s235
    %p237 = scmp.eq.s32.totalorder %s236, 0
    %s239 = sadd.s32 %s238, 1
    %s240 = scalar_select %p237, %s238, %s239
    %p243 = pneg %p237
    %p244 = scmp.eq.s32.totalorder %s34, 10
    %p245 = por %p243, %p244
    %p246 = scmp.ne.s32.totalorder %s238, %s241
    %p247 = scmp.eq.s32.totalorder %s34, 0
    %p248 = por %p246, %p247
    %p249 = scmp.ne.s32.totalorder %s238, %s241
    %p250 = scmp.eq.s32.totalorder %s39, 10
    %p251 = por %p249, %p250
    %p252 = scmp.ne.s32.totalorder %s241, %s242
    %p253 = scmp.eq.s32.totalorder %s39, 0
    %p254 = por %p252, %p253
    %p255 = scmp.ne.s32.totalorder %s241, %s242
    %p256 = scmp.eq.s32.totalorder %s40, 10
    %p257 = por %p255, %p256
    %p259 = scmp.ne.s32.totalorder %s242, %s258
    %p260 = scmp.eq.s32.totalorder %s40, 0
    %p261 = por %p259, %p260
    %s262 = sld [smem:[#allocation5 + %s34]]
    %s263 = sld [smem:[#allocation5 + %s41]]
    %s264 = ssub.s32 %s262, %s263
    %p265 = scmp.eq.s32.totalorder %s264, 0
    %s267 = sadd.s32 %s266, 1
    %s268 = scalar_select %p265, %s266, %s267
    %p271 = pneg %p265
    %p272 = scmp.eq.s32.totalorder %s34, 10
    %p273 = por %p271, %p272
    %p274 = scmp.ne.s32.totalorder %s266, %s269
    %p275 = scmp.eq.s32.totalorder %s34, 0
    %p276 = por %p274, %p275
    %p277 = scmp.ne.s32.totalorder %s266, %s269
    %p278 = scmp.eq.s32.totalorder %s39, 10
    %p279 = por %p277, %p278
    %p280 = scmp.ne.s32.totalorder %s269, %s270
    %p281 = scmp.eq.s32.totalorder %s39, 0
    %p282 = por %p280, %p281
    %p283 = scmp.ne.s32.totalorder %s269, %s270
    %p284 = scmp.eq.s32.totalorder %s40, 10
    %p285 = por %p283, %p284
    %p287 = scmp.ne.s32.totalorder %s270, %s286
    %p288 = scmp.eq.s32.totalorder %s40, 0
    %p289 = por %p287, %p288
    %s290 = sld [smem:[#allocation5 + %s34]]
    %s291 = sld [smem:[#allocation5 + %s41]]
    %s292 = ssub.s32 %s290, %s291
    %p293 = scmp.eq.s32.totalorder %s292, 0
    %s295 = sadd.s32 %s294, 1
    %s296 = scalar_select %p293, %s294, %s295
    %p299 = pneg %p293
    %p300 = scmp.eq.s32.totalorder %s34, 10
    %p301 = por %p299, %p300
    %p302 = scmp.ne.s32.totalorder %s294, %s297
    %p303 = scmp.eq.s32.totalorder %s34, 0
    %p304 = por %p302, %p303
    %p305 = scmp.ne.s32.totalorder %s294, %s297
    %p306 = scmp.eq.s32.totalorder %s39, 10
    %p307 = por %p305, %p306
    %p308 = scmp.ne.s32.totalorder %s297, %s298
    %p309 = scmp.eq.s32.totalorder %s39, 0
    %p310 = por %p308, %p309
    %p311 = scmp.ne.s32.totalorder %s297, %s298
    %p312 = scmp.eq.s32.totalorder %s40, 10
    %p313 = por %p311, %p312
    %p315 = scmp.ne.s32.totalorder %s298, %s314
    %p316 = scmp.eq.s32.totalorder %s40, 0
    %p317 = por %p315, %p316
    %s318 = sld [smem:[#allocation5 + %s34]]
    %s319 = sld [smem:[#allocation5 + %s41]]
    %s320 = ssub.s32 %s318, %s319
    %p321 = scmp.eq.s32.totalorder %s320, 0
    %s323 = sadd.s32 %s322, 1
    %s324 = scalar_select %p321, %s322, %s323
    %p327 = pneg %p321
    %p328 = scmp.eq.s32.totalorder %s34, 10
    %p329 = por %p327, %p328
    %p330 = scmp.ne.s32.totalorder %s322, %s325
    %p331 = scmp.eq.s32.totalorder %s34, 0
    %p332 = por %p330, %p331
    %p333 = scmp.ne.s32.totalorder %s322, %s325
    %p334 = scmp.eq.s32.totalorder %s39, 10
    %p335 = por %p333, %p334
    %p336 = scmp.ne.s32.totalorder %s325, %s326
    %p337 = scmp.eq.s32.totalorder %s39, 0
    %p338 = por %p336, %p337
    %p339 = scmp.ne.s32.totalorder %s325, %s326
    %p340 = scmp.eq.s32.totalorder %s40, 10
    %p341 = por %p339, %p340
    %p343 = scmp.ne.s32.totalorder %s326, %s342
    %p344 = scmp.eq.s32.totalorder %s40, 0
    %p345 = por %p343, %p344
    %s346 = ssub.s32 %s34, %s41
    %p347 = scmp.eq.s32.totalorder %s346, 0
    %s349 = sadd.s32 %s348, 1
    %s350 = scalar_select %p347, %s348, %s349
    %p353 = pneg %p347
    %p354 = scmp.eq.s32.totalorder %s34, 10
    %p355 = por %p353, %p354
    %p356 = scmp.ne.s32.totalorder %s348, %s351
    %p357 = scmp.eq.s32.totalorder %s34, 0
    %p358 = por %p356, %p357
    %p359 = scmp.ne.s32.totalorder %s348, %s351
    %p360 = scmp.eq.s32.totalorder %s39, 10
    %p361 = por %p359, %p360
    %p362 = scmp.ne.s32.totalorder %s351, %s352
    %p363 = scmp.eq.s32.totalorder %s39, 0
    %p364 = por %p362, %p363
    %p365 = scmp.ne.s32.totalorder %s351, %s352
    %p366 = scmp.eq.s32.totalorder %s40, 10
    %p367 = por %p365, %p366
    %p369 = scmp.ne.s32.totalorder %s352, %s368
    %p370 = scmp.eq.s32.totalorder %s40, 0
    %p371 = por %p369, %p370
    %p372 = scmp.le.s32.totalorder 1, %s34
    %p373 = scmp.lt.s32.totalorder %s34, 12
    %p374 = pnand %p372, %p373
    %p375 = pneg %p374
    // Predicated region
    $region9: #{_lambda_.6} parent=5 // pred_check
      _
    $region10: #{_lambda_.6} parent=5 // pred_check_branch
      %377 = sbr.rel (%p374) target = $region12
    $region11: #{_lambda_.6} parent=5 // pred_region
      %s378 = ssub.s32 %s34, 1
    $region12: #{_lambda_.6} parent=5 // pred_fallthru
      _
    %p379 = scmp.lt.s32.totalorder %s34, 11
    // Predicated region
    $region13: #{_lambda_.6} parent=5 // pred_check
      %p380 = pneg %p379
    $region14: #{_lambda_.6} parent=5 // pred_check_branch
      %382 = sbr.rel (%p380) target = $region16
    $region15: #{_lambda_.6} parent=5 // pred_region
      // Predicated region
      $region17: #{_lambda_.6} parent=15 // pred_check
        %p383 = pneg %p54
      $region18: #{_lambda_.6} parent=15 // pred_check_branch
        %385 = sbr.rel (%p383) target = $region20
      $region19: #{_lambda_.6} parent=15 // pred_region
        %p386 = scmp.lt.s32.totalorder %s34, 10
        %s387 = scalar_select %p386, %s34, 10
        %s388 = smul.addr %s387, 4
        %s389 = scalar_lea.vmem %s3, %s388
      $region20: #{_lambda_.6} parent=15 // pred_fallthru
        _
      // Predicated region
      $region21: #{_lambda_.6} parent=15 // pred_check
        %p390 = pneg %p80
      $region22: #{_lambda_.6} parent=15 // pred_check_branch
        %392 = sbr.rel (%p390) target = $region24
      $region23: #{_lambda_.6} parent=15 // pred_region
        %p393 = scmp.lt.s32.totalorder %s34, 10
        %s394 = scalar_select %p393, %s34, 10
        %s395 = smul.addr %s394, 4
        %s396 = scalar_lea.vmem %s4, %s395
      $region24: #{_lambda_.6} parent=15 // pred_fallthru
        _
      // Predicated region
      $region25: #{_lambda_.6} parent=15 // pred_check
        %p397 = pneg %p108
      $region26: #{_lambda_.6} parent=15 // pred_check_branch
        %399 = sbr.rel (%p397) target = $region28
      $region27: #{_lambda_.6} parent=15 // pred_region
        %s400 = sld [smem:[#allocation3 + %s34]]
        %p401 = scmp.lt.s32.totalorder %s400, 1
        %s402 = scalar_select %p401, %s400, 1
        %s403 = smul.addr %s402, 4
        %s404 = smul.addr %s403, 4
        %s405 = scalar_lea.vmem %s5, %s404
        %s406 = sld [smem:[#allocation3 + %s34]]
      $region28: #{_lambda_.6} parent=15 // pred_fallthru
        _
      // Predicated region
      $region29: #{_lambda_.6} parent=15 // pred_check
        %p407 = pneg %p136
      $region30: #{_lambda_.6} parent=15 // pred_check_branch
        %409 = sbr.rel (%p407) target = $region32
      $region31: #{_lambda_.6} parent=15 // pred_region
        %s410 = sld [smem:[#allocation3 + %s34]]
        %p411 = scmp.lt.s32.totalorder %s410, 1
        %s412 = scalar_select %p411, %s410, 1
        %s413 = scalar_lea.vmem %s6, %s412
        %s414 = sld [smem:[#allocation3 + %s34]]
      $region32: #{_lambda_.6} parent=15 // pred_fallthru
        _
      // Predicated region
      $region33: #{_lambda_.6} parent=15 // pred_check
        %p415 = pneg %p164
      $region34: #{_lambda_.6} parent=15 // pred_check_branch
        %417 = sbr.rel (%p415) target = $region36
      $region35: #{_lambda_.6} parent=15 // pred_region
        %s418 = sld [smem:[#allocation4 + %s34]]
        %p419 = scmp.lt.s32.totalorder %s418, 1
        %s420 = scalar_select %p419, %s418, 1
        %s421 = smul.addr %s420, 4
        %s422 = smul.addr %s421, 4
        %s423 = scalar_lea.vmem %s7, %s422
        %s424 = sld [smem:[#allocation4 + %s34]]
      $region36: #{_lambda_.6} parent=15 // pred_fallthru
        _
      // Predicated region
      $region37: #{_lambda_.6} parent=15 // pred_check
        %p425 = pneg %p192
      $region38: #{_lambda_.6} parent=15 // pred_check_branch
        %427 = sbr.rel (%p425) target = $region40
      $region39: #{_lambda_.6} parent=15 // pred_region
        %s428 = sld [smem:[#allocation4 + %s34]]
        %p429 = scmp.lt.s32.totalorder %s428, 1
        %s430 = scalar_select %p429, %s428, 1
        %s431 = scalar_lea.vmem %s8, %s430
        %s432 = sld [smem:[#allocation4 + %s34]]
      $region40: #{_lambda_.6} parent=15 // pred_fallthru
        _
      // Predicated region
      $region41: #{_lambda_.6} parent=15 // pred_check
        %p433 = pneg %p220
      $region42: #{_lambda_.6} parent=15 // pred_check_branch
        %435 = sbr.rel (%p433) target = $region44
      $region43: #{_lambda_.6} parent=15 // pred_region
        %s436 = sld [smem:[#allocation4 + %s34]]
        %p437 = scmp.lt.s32.totalorder %s436, 1
        %s438 = scalar_select %p437, %s436, 1
        %s439 = smul.addr %s438, 4
        %s440 = smul.addr %s439, 4
        %s441 = scalar_lea.vmem %s9, %s440
        %s442 = sld [smem:[#allocation4 + %s34]]
      $region44: #{_lambda_.6} parent=15 // pred_fallthru
        _
      // Predicated region
      $region45: #{_lambda_.6} parent=15 // pred_check
        %p443 = pneg %p248
      $region46: #{_lambda_.6} parent=15 // pred_check_branch
        %445 = sbr.rel (%p443) target = $region48
      $region47: #{_lambda_.6} parent=15 // pred_region
        %s446 = sld [smem:[#allocation4 + %s34]]
        %p447 = scmp.lt.s32.totalorder %s446, 1
        %s448 = scalar_select %p447, %s446, 1
        %s449 = scalar_lea.vmem %s10, %s448
        %s450 = sld [smem:[#allocation4 + %s34]]
      $region48: #{_lambda_.6} parent=15 // pred_fallthru
        _
      // Predicated region
      $region49: #{_lambda_.6} parent=15 // pred_check
        %p451 = pneg %p276
      $region50: #{_lambda_.6} parent=15 // pred_check_branch
        %453 = sbr.rel (%p451) target = $region52
      $region51: #{_lambda_.6} parent=15 // pred_region
        %s454 = sld [smem:[#allocation5 + %s34]]
        %p455 = scmp.lt.s32.totalorder %s454, 1
        %s456 = scalar_select %p455, %s454, 1
        %s457 = smul.addr %s456, 4
        %s458 = smul.addr %s457, 4
        %s459 = scalar_lea.vmem %s11, %s458
        %s460 = sld [smem:[#allocation5 + %s34]]
      $region52: #{_lambda_.6} parent=15 // pred_fallthru
        _
      // Predicated region
      $region53: #{_lambda_.6} parent=15 // pred_check
        %p461 = pneg %p304
      $region54: #{_lambda_.6} parent=15 // pred_check_branch
        %463 = sbr.rel (%p461) target = $region56
      $region55: #{_lambda_.6} parent=15 // pred_region
        %s464 = sld [smem:[#allocation5 + %s34]]
        %p465 = scmp.lt.s32.totalorder %s464, 1
        %s466 = scalar_select %p465, %s464, 1
        %s467 = smul.addr %s466, 4
        %s468 = smul.addr %s467, 4
        %s469 = scalar_lea.vmem %s12, %s468
        %s470 = sld [smem:[#allocation5 + %s34]]
      $region56: #{_lambda_.6} parent=15 // pred_fallthru
        _
      // Predicated region
      $region57: #{_lambda_.6} parent=15 // pred_check
        %p471 = pneg %p332
      $region58: #{_lambda_.6} parent=15 // pred_check_branch
        %473 = sbr.rel (%p471) target = $region60
      $region59: #{_lambda_.6} parent=15 // pred_region
        %s474 = sld [smem:[#allocation5 + %s34]]
        %p475 = scmp.lt.s32.totalorder %s474, 1
        %s476 = scalar_select %p475, %s474, 1
        %s477 = smul.addr %s476, 4
        %s478 = smul.addr %s477, 4
        %s479 = scalar_lea.vmem %s13, %s478
        %s480 = sld [smem:[#allocation5 + %s34]]
      $region60: #{_lambda_.6} parent=15 // pred_fallthru
        _
    $region16: #{_lambda_.6} parent=5 // pred_fallthru
      _
    %p481 = scmp.le.s32.totalorder 1, %s34
    %p482 = scmp.lt.s32.totalorder %s34, 12
    %p483 = pnand %p481, %p482
    %p484 = pneg %p483
    // Predicated region
    $region61: #{_lambda_.6} parent=5 // pred_check
      _
    $region62: #{_lambda_.6} parent=5 // pred_check_branch
      %486 = sbr.rel (%p483) target = $region64
    $region63: #{_lambda_.6} parent=5 // pred_region
      %s487 = ssub.s32 %s34, 1
      %p488 = scmp.lt.s32.totalorder %s39, 10
      %s489 = scalar_select %p488, %s39, 10
      %s490 = smul.addr %s489, 4
      %s491 = scalar_lea.vmem %s3, %s490
      %p492 = pneg %p60
      %p493 = pneg %p57
      %p494 = scmp.lt.s32.totalorder %s39, 10
      %s495 = scalar_select %p494, %s39, 10
      %s496 = smul.addr %s495, 4
      %s497 = scalar_lea.vmem %s4, %s496
      %p498 = pneg %p86
      %p499 = pneg %p83
      %s500 = sld [smem:[#allocation3 + %s39]]
      %p501 = scmp.lt.s32.totalorder %s500, 1
      %s502 = scalar_select %p501, %s500, 1
      %s503 = smul.addr %s502, 4
      %s504 = smul.addr %s503, 4
      %s505 = scalar_lea.vmem %s5, %s504
      %p506 = pneg %p114
      %p507 = pneg %p111
      %s508 = sld [smem:[#allocation3 + %s39]]
      %p509 = scmp.lt.s32.totalorder %s508, 1
      %s510 = scalar_select %p509, %s508, 1
      %s511 = scalar_lea.vmem %s6, %s510
      %p512 = pneg %p142
      %p513 = pneg %p139
      %s514 = sld [smem:[#allocation4 + %s39]]
      %p515 = scmp.lt.s32.totalorder %s514, 1
      %s516 = scalar_select %p515, %s514, 1
      %s517 = smul.addr %s516, 4
      %s518 = smul.addr %s517, 4
      %s519 = scalar_lea.vmem %s7, %s518
      %p520 = pneg %p170
      %p521 = pneg %p167
      %s522 = sld [smem:[#allocation4 + %s39]]
      %p523 = scmp.lt.s32.totalorder %s522, 1
      %s524 = scalar_select %p523, %s522, 1
      %s525 = scalar_lea.vmem %s8, %s524
      %p526 = pneg %p198
      %p527 = pneg %p195
      %s528 = sld [smem:[#allocation4 + %s39]]
      %p529 = scmp.lt.s32.totalorder %s528, 1
      %s530 = scalar_select %p529, %s528, 1
      %s531 = smul.addr %s530, 4
      %s532 = smul.addr %s531, 4
      %s533 = scalar_lea.vmem %s9, %s532
      %p534 = pneg %p226
      %p535 = pneg %p223
      %s536 = sld [smem:[#allocation4 + %s39]]
      %p537 = scmp.lt.s32.totalorder %s536, 1
      %s538 = scalar_select %p537, %s536, 1
      %s539 = scalar_lea.vmem %s10, %s538
      %p540 = pneg %p254
      %p541 = pneg %p251
      %s542 = sld [smem:[#allocation5 + %s39]]
      %p543 = scmp.lt.s32.totalorder %s542, 1
      %s544 = scalar_select %p543, %s542, 1
      %s545 = smul.addr %s544, 4
      %s546 = smul.addr %s545, 4
      %s547 = scalar_lea.vmem %s11, %s546
      %p548 = pneg %p282
      %p549 = pneg %p279
      %s550 = sld [smem:[#allocation5 + %s39]]
      %p551 = scmp.lt.s32.totalorder %s550, 1
      %s552 = scalar_select %p551, %s550, 1
      %s553 = smul.addr %s552, 4
      %s554 = smul.addr %s553, 4
      %s555 = scalar_lea.vmem %s12, %s554
      %p556 = pneg %p310
      %p557 = pneg %p307
      %s558 = sld [smem:[#allocation5 + %s39]]
      %p559 = scmp.lt.s32.totalorder %s558, 1
      %s560 = scalar_select %p559, %s558, 1
      %s561 = smul.addr %s560, 4
      %s562 = smul.addr %s561, 4
      %s563 = scalar_lea.vmem %s13, %s562
      %p564 = pneg %p338
      %p565 = pneg %p335
      %p566 = pneg %p364
      %p567 = pneg %p361
      %p568 = scmp.lt.s32.totalorder %s39, 10
      %s569 = scalar_select %p568, %s39, 10
      %s570 = smul.addr %s569, 8
      %s571 = scalar_lea.vmem %s14, %s570
      %p572 = scmp.lt.s32.totalorder %s39, 10
      %s573 = scalar_select %p572, %s39, 10
      %s574 = smul.addr %s573, 4
      %s575 = scalar_lea.vmem %s3, %s574
      %p576 = scmp.lt.s32.totalorder %s39, 10
      %s577 = scalar_select %p576, %s39, 10
      %s578 = smul.addr %s577, 4
      %s579 = scalar_lea.vmem %s4, %s578
      %s580 = sld [smem:[#allocation3 + %s39]]
      %p581 = scmp.lt.s32.totalorder %s580, 1
      %s582 = scalar_select %p581, %s580, 1
      %s583 = smul.addr %s582, 4
      %s584 = smul.addr %s583, 4
      %s585 = scalar_lea.vmem %s5, %s584
      %s586 = sld [smem:[#allocation3 + %s39]]
      %s587 = sld [smem:[#allocation3 + %s39]]
      %p588 = scmp.lt.s32.totalorder %s587, 1
      %s589 = scalar_select %p588, %s587, 1
      %s590 = scalar_lea.vmem %s6, %s589
      %s591 = sld [smem:[#allocation3 + %s39]]
      %s592 = sld [smem:[#allocation4 + %s39]]
      %p593 = scmp.lt.s32.totalorder %s592, 1
      %s594 = scalar_select %p593, %s592, 1
      %s595 = smul.addr %s594, 4
      %s596 = smul.addr %s595, 4
      %s597 = scalar_lea.vmem %s7, %s596
      %s598 = sld [smem:[#allocation4 + %s39]]
      %s599 = sld [smem:[#allocation4 + %s39]]
      %p600 = scmp.lt.s32.totalorder %s599, 1
      %s601 = scalar_select %p600, %s599, 1
      %s602 = scalar_lea.vmem %s8, %s601
      %s603 = sld [smem:[#allocation4 + %s39]]
      %s604 = sld [smem:[#allocation4 + %s39]]
      %p605 = scmp.lt.s32.totalorder %s604, 1
      %s606 = scalar_select %p605, %s604, 1
      %s607 = smul.addr %s606, 4
      %s608 = smul.addr %s607, 4
      %s609 = scalar_lea.vmem %s9, %s608
      %s610 = sld [smem:[#allocation4 + %s39]]
      %s611 = sld [smem:[#allocation4 + %s39]]
      %p612 = scmp.lt.s32.totalorder %s611, 1
      %s613 = scalar_select %p612, %s611, 1
      %s614 = scalar_lea.vmem %s10, %s613
      %s615 = sld [smem:[#allocation4 + %s39]]
      %s616 = sld [smem:[#allocation5 + %s39]]
      %p617 = scmp.lt.s32.totalorder %s616, 1
      %s618 = scalar_select %p617, %s616, 1
      %s619 = smul.addr %s618, 4
      %s620 = smul.addr %s619, 4
      %s621 = scalar_lea.vmem %s11, %s620
      %s622 = sld [smem:[#allocation5 + %s39]]
      %s623 = sld [smem:[#allocation5 + %s39]]
      %p624 = scmp.lt.s32.totalorder %s623, 1
      %s625 = scalar_select %p624, %s623, 1
      %s626 = smul.addr %s625, 4
      %s627 = smul.addr %s626, 4
      %s628 = scalar_lea.vmem %s12, %s627
      %s629 = sld [smem:[#allocation5 + %s39]]
      %s630 = sld [smem:[#allocation5 + %s39]]
      %p631 = scmp.lt.s32.totalorder %s630, 1
      %s632 = scalar_select %p631, %s630, 1
      %s633 = smul.addr %s632, 4
      %s634 = smul.addr %s633, 4
      %s635 = scalar_lea.vmem %s13, %s634
      %s636 = sld [smem:[#allocation5 + %s39]]
      %p637 = scmp.lt.s32.totalorder %s39, 10
      %s638 = scalar_select %p637, %s39, 10
      %s639 = smul.addr %s638, 8
      %s640 = scalar_lea.vmem %s14, %s639
      %v642 = vld [vmem:[%s575] sm:$0xf]
      %v643 = vld [vmem:[%s579] sm:$0xf]
      %v644 = vld [vmem:[%s585] sm:$0xf]
      %v645 = vld [vmem:[%s585 + $0x4] sm:$0xf]
      %v646 = vld [vmem:[%s585 + $0x8] sm:$0xf]
      %v647 = vld [vmem:[%s585 + $0xc] sm:$0xf]
      %v648 = vld [vmem:[%s590] sm:$0x1]
      %v650 = vlaneseq
      %v651 = vshrl.u32 %v650, 7
      %v652 = vsub.s32 0, %v651
      %v653 = vrot.slane %v648, %v652
      %v659 = vunpack.c.l.b16 %v644
      %v660 = vunpack.c.l.b16 %v645
      %v661 = vunpack.c.l.b16 %v646
      %v662 = vunpack.c.l.b16 %v647
      %v663 = vpack.c.b16 %v660, %v659
      %v664 = vpack.c.b16 %v662, %v661
      %vm667 = vcmask 261120
      %v669 = vsel %vm667, %v642, 0
      %671 = vmatprep.subr.bf16.mxu0 0
      %672 = vmatpush1.bf16.msra.mxu0 0
      %673 = vmatprep.subr.bf16.mxu0 0
      %674 = vmatpush1.bf16.msra.mxu0 0
      %675 = vmatprep.subr.bf16.mxu0 0
      %676 = vmatpush1.bf16.msra.mxu0 0
      %677 = vmatprep.subr.bf16.mxu0 0
      %678 = vmatpush1.bf16.msra.mxu0 0
      %679 = vmatprep.subr.bf16.mxu0 0
      %680 = vmatpush1.bf16.msra.mxu0 0
      %681 = vmatprep.subr.bf16.mxu0 0
      %682 = vmatpush1.bf16.msra.mxu0 0
      %683 = vmatprep.subr.bf16.mxu0 0
      %684 = vmatpush1.bf16.msra.mxu0 %v664
      %685 = vmatprep.subr.bf16.mxu0 0
      %686 = vmatpush1.bf16.msra.mxu0 %v663
      %687 = vmatprep.subr.bf16.mxu0 0
      %688 = vmatpush2.bf16.msra.mxu0 0
      %689 = vmatprep.subr.bf16.mxu0 0
      %690 = vmatpush2.bf16.msra.mxu0 0
      %691 = vmatprep.subr.bf16.mxu0 0
      %692 = vmatpush2.bf16.msra.mxu0 0
      %693 = vmatprep.subr.bf16.mxu0 0
      %694 = vmatpush2.bf16.msra.mxu0 0
      %695 = vmatprep.subr.bf16.mxu0 0
      %696 = vmatpush2.bf16.msra.mxu0 0
      %697 = vmatprep.subr.bf16.mxu0 0
      %698 = vmatpush2.bf16.msra.mxu0 0
      %699 = vmatprep.subr.bf16.mxu0 0
      %700 = vmatpush2.bf16.msra.mxu0 0
      %701 = vmatprep.subr.bf16.mxu0 0
      %702 = vmatpush2.bf16.msra.mxu0 0
      %703 = vmatprep.mubr.bf16.mxu0 0
      %704 = vmatmul.mubr.bf16.gmra.mxu0 %v669
      %v705 = vpop.f32.mrf.mxu0
      %v706 = vadd.f32 %v653, %v705
      %v707 = vpop.f32.mrf.mxu0
      %v708 = vpop.f32.mrf.mxu0
      %v709 = vpop.f32.mrf.mxu0
      %710 = vdwg.mxu0
      %v711 = vld [vmem:[%s597] sm:$0xf]
      %v712 = vld [vmem:[%s597 + $0x4] sm:$0xf]
      %v713 = vld [vmem:[%s597 + $0x8] sm:$0xf]
      %v714 = vld [vmem:[%s597 + $0xc] sm:$0xf]
      %v715 = vld [vmem:[%s602] sm:$0x1]
      %v717 = vlaneseq
      %v718 = vshrl.u32 %v717, 7
      %v719 = vsub.s32 0, %v718
      %v720 = vrot.slane %v715, %v719
      %v726 = vunpack.c.l.b16 %v711
      %v727 = vunpack.c.l.b16 %v712
      %v728 = vunpack.c.l.b16 %v713
      %v729 = vunpack.c.l.b16 %v714
      %v730 = vpack.c.b16 %v727, %v726
      %v731 = vpack.c.b16 %v729, %v728
      %v735 = vsel %vm667, %v643, 0
      %737 = vmatprep.subr.bf16.mxu0 0
      %738 = vmatpush1.bf16.msra.mxu0 0
      %739 = vmatprep.subr.bf16.mxu0 0
      %740 = vmatpush1.bf16.msra.mxu0 0
      %741 = vmatprep.subr.bf16.mxu0 0
      %742 = vmatpush1.bf16.msra.mxu0 0
      %743 = vmatprep.subr.bf16.mxu0 0
      %744 = vmatpush1.bf16.msra.mxu0 0
      %745 = vmatprep.subr.bf16.mxu0 0
      %746 = vmatpush1.bf16.msra.mxu0 0
      %747 = vmatprep.subr.bf16.mxu0 0
      %748 = vmatpush1.bf16.msra.mxu0 0
      %749 = vmatprep.subr.bf16.mxu0 0
      %750 = vmatpush1.bf16.msra.mxu0 %v731
      %751 = vmatprep.subr.bf16.mxu0 0
      %752 = vmatpush1.bf16.msra.mxu0 %v730
      %753 = vmatprep.subr.bf16.mxu0 0
      %754 = vmatpush2.bf16.msra.mxu0 0
      %755 = vmatprep.subr.bf16.mxu0 0
      %756 = vmatpush2.bf16.msra.mxu0 0
      %757 = vmatprep.subr.bf16.mxu0 0
      %758 = vmatpush2.bf16.msra.mxu0 0
      %759 = vmatprep.subr.bf16.mxu0 0
      %760 = vmatpush2.bf16.msra.mxu0 0
      %761 = vmatprep.subr.bf16.mxu0 0
      %762 = vmatpush2.bf16.msra.mxu0 0
      %763 = vmatprep.subr.bf16.mxu0 0
      %764 = vmatpush2.bf16.msra.mxu0 0
      %765 = vmatprep.subr.bf16.mxu0 0
      %766 = vmatpush2.bf16.msra.mxu0 0
      %767 = vmatprep.subr.bf16.mxu0 0
      %768 = vmatpush2.bf16.msra.mxu0 0
      %769 = vmatprep.mubr.bf16.mxu0 0
      %770 = vmatmul.mubr.bf16.gmra.mxu0 %v735
      %v771 = vpop.f32.mrf.mxu0
      %v772 = vadd.f32 %v720, %v771
      %v773 = vpop.f32.mrf.mxu0
      %v774 = vpop.f32.mrf.mxu0
      %v775 = vpop.f32.mrf.mxu0
      %776 = vdwg.mxu0
      %v777 = vld [vmem:[%s609] sm:$0xf]
      %v778 = vld [vmem:[%s609 + $0x4] sm:$0xf]
      %v779 = vld [vmem:[%s609 + $0x8] sm:$0xf]
      %v780 = vld [vmem:[%s609 + $0xc] sm:$0xf]
      %v781 = vld [vmem:[%s614] sm:$0x1]
      %v783 = vlaneseq
      %v784 = vshrl.u32 %v783, 7
      %v785 = vsub.s32 0, %v784
      %v786 = vrot.slane %v781, %v785
      %v792 = vunpack.c.l.b16 %v777
      %v793 = vunpack.c.l.b16 %v778
      %v794 = vunpack.c.l.b16 %v779
      %v795 = vunpack.c.l.b16 %v780
      %v796 = vpack.c.b16 %v793, %v792
      %v797 = vpack.c.b16 %v795, %v794
      %800 = vmatprep.subr.bf16.mxu0 0
      %801 = vmatpush1.bf16.msra.mxu0 0
      %802 = vmatprep.subr.bf16.mxu0 0
      %803 = vmatpush1.bf16.msra.mxu0 0
      %804 = vmatprep.subr.bf16.mxu0 0
      %805 = vmatpush1.bf16.msra.mxu0 0
      %806 = vmatprep.subr.bf16.mxu0 0
      %807 = vmatpush1.bf16.msra.mxu0 0
      %808 = vmatprep.subr.bf16.mxu0 0
      %809 = vmatpush1.bf16.msra.mxu0 0
      %810 = vmatprep.subr.bf16.mxu0 0
      %811 = vmatpush1.bf16.msra.mxu0 0
      %812 = vmatprep.subr.bf16.mxu0 0
      %813 = vmatpush1.bf16.msra.mxu0 %v797
      %814 = vmatprep.subr.bf16.mxu0 0
      %815 = vmatpush1.bf16.msra.mxu0 %v796
      %816 = vmatprep.subr.bf16.mxu0 0
      %817 = vmatpush2.bf16.msra.mxu0 0
      %818 = vmatprep.subr.bf16.mxu0 0
      %819 = vmatpush2.bf16.msra.mxu0 0
      %820 = vmatprep.subr.bf16.mxu0 0
      %821 = vmatpush2.bf16.msra.mxu0 0
      %822 = vmatprep.subr.bf16.mxu0 0
      %823 = vmatpush2.bf16.msra.mxu0 0
      %824 = vmatprep.subr.bf16.mxu0 0
      %825 = vmatpush2.bf16.msra.mxu0 0
      %826 = vmatprep.subr.bf16.mxu0 0
      %827 = vmatpush2.bf16.msra.mxu0 0
      %828 = vmatprep.subr.bf16.mxu0 0
      %829 = vmatpush2.bf16.msra.mxu0 0
      %830 = vmatprep.subr.bf16.mxu0 0
      %831 = vmatpush2.bf16.msra.mxu0 0
      %832 = vmatprep.mubr.bf16.mxu0 0
      %833 = vmatmul.mubr.bf16.gmra.mxu0 %v735
      %v834 = vpop.f32.mrf.mxu0
      %v835 = vadd.f32 %v786, %v834
      %v836 = vpop.f32.mrf.mxu0
      %v837 = vpop.f32.mrf.mxu0
      %v838 = vpop.f32.mrf.mxu0
      %839 = vdwg.mxu0
      %v840 = vpack.c.bf16 %v772, %v772
      %v841 = vld [vmem:[%s621] sm:$0xf]
      %v842 = vld [vmem:[%s621 + $0x4] sm:$0xf]
      %v843 = vld [vmem:[%s621 + $0x8] sm:$0xf]
      %v844 = vld [vmem:[%s621 + $0xc] sm:$0xf]
      %v849 = vunpack.c.l.b16 %v841
      %v850 = vunpack.c.l.b16 %v842
      %v851 = vunpack.c.l.b16 %v843
      %v852 = vunpack.c.l.b16 %v844
      %v853 = vpack.c.b16 %v850, %v849
      %v854 = vpack.c.b16 %v852, %v851
      %v858 = vsel %vm667, %v840, 0
      %860 = vmatprep.subr.bf16.mxu0 0
      %861 = vmatpush1.bf16.msra.mxu0 0
      %862 = vmatprep.subr.bf16.mxu0 0
      %863 = vmatpush1.bf16.msra.mxu0 0
      %864 = vmatprep.subr.bf16.mxu0 0
      %865 = vmatpush1.bf16.msra.mxu0 0
      %866 = vmatprep.subr.bf16.mxu0 0
      %867 = vmatpush1.bf16.msra.mxu0 0
      %868 = vmatprep.subr.bf16.mxu0 0
      %869 = vmatpush1.bf16.msra.mxu0 0
      %870 = vmatprep.subr.bf16.mxu0 0
      %871 = vmatpush1.bf16.msra.mxu0 0
      %872 = vmatprep.subr.bf16.mxu0 0
      %873 = vmatpush1.bf16.msra.mxu0 %v854
      %874 = vmatprep.subr.bf16.mxu0 0
      %875 = vmatpush1.bf16.msra.mxu0 %v853
      %876 = vmatprep.subr.bf16.mxu0 0
      %877 = vmatpush2.bf16.msra.mxu0 0
      %878 = vmatprep.subr.bf16.mxu0 0
      %879 = vmatpush2.bf16.msra.mxu0 0
      %880 = vmatprep.subr.bf16.mxu0 0
      %881 = vmatpush2.bf16.msra.mxu0 0
      %882 = vmatprep.subr.bf16.mxu0 0
      %883 = vmatpush2.bf16.msra.mxu0 0
      %884 = vmatprep.subr.bf16.mxu0 0
      %885 = vmatpush2.bf16.msra.mxu0 0
      %886 = vmatprep.subr.bf16.mxu0 0
      %887 = vmatpush2.bf16.msra.mxu0 0
      %888 = vmatprep.subr.bf16.mxu0 0
      %889 = vmatpush2.bf16.msra.mxu0 0
      %890 = vmatprep.subr.bf16.mxu0 0
      %891 = vmatpush2.bf16.msra.mxu0 0
      %892 = vmatprep.mubr.bf16.mxu0 0
      %893 = vmatmul.mubr.bf16.gmra.mxu0 %v858
      %v894 = vpop.f32.mrf.mxu0
      %v895 = vadd.f32 0.0, %v894
      %v896 = vpop.f32.mrf.mxu0
      %v897 = vpop.f32.mrf.mxu0
      %v898 = vpop.f32.mrf.mxu0
      %899 = vdwg.mxu0
      %v900 = vmul.f32 %v706, %v895
      %v901 = vpack.c.bf16 %v900, %v900
      %v902 = vld [vmem:[%s635] sm:$0xf]
      %v903 = vld [vmem:[%s635 + $0x4] sm:$0xf]
      %v904 = vld [vmem:[%s635 + $0x8] sm:$0xf]
      %v905 = vld [vmem:[%s635 + $0xc] sm:$0xf]
      %v910 = vunpack.c.l.b16 %v902
      %v911 = vunpack.c.l.b16 %v903
      %v912 = vunpack.c.l.b16 %v904
      %v913 = vunpack.c.l.b16 %v905
      %v914 = vpack.c.b16 %v911, %v910
      %v915 = vpack.c.b16 %v913, %v912
      %v919 = vsel %vm667, %v901, 0
      %921 = vmatprep.subr.bf16.mxu0 0
      %922 = vmatpush1.bf16.msra.mxu0 0
      %923 = vmatprep.subr.bf16.mxu0 0
      %924 = vmatpush1.bf16.msra.mxu0 0
      %925 = vmatprep.subr.bf16.mxu0 0
      %926 = vmatpush1.bf16.msra.mxu0 0
      %927 = vmatprep.subr.bf16.mxu0 0
      %928 = vmatpush1.bf16.msra.mxu0 0
      %929 = vmatprep.subr.bf16.mxu0 0
      %930 = vmatpush1.bf16.msra.mxu0 0
      %931 = vmatprep.subr.bf16.mxu0 0
      %932 = vmatpush1.bf16.msra.mxu0 0
      %933 = vmatprep.subr.bf16.mxu0 0
      %934 = vmatpush1.bf16.msra.mxu0 %v915
      %935 = vmatprep.subr.bf16.mxu0 0
      %936 = vmatpush1.bf16.msra.mxu0 %v914
      %937 = vmatprep.subr.bf16.mxu0 0
      %938 = vmatpush2.bf16.msra.mxu0 0
      %939 = vmatprep.subr.bf16.mxu0 0
      %940 = vmatpush2.bf16.msra.mxu0 0
      %941 = vmatprep.subr.bf16.mxu0 0
      %942 = vmatpush2.bf16.msra.mxu0 0
      %943 = vmatprep.subr.bf16.mxu0 0
      %944 = vmatpush2.bf16.msra.mxu0 0
      %945 = vmatprep.subr.bf16.mxu0 0
      %946 = vmatpush2.bf16.msra.mxu0 0
      %947 = vmatprep.subr.bf16.mxu0 0
      %948 = vmatpush2.bf16.msra.mxu0 0
      %949 = vmatprep.subr.bf16.mxu0 0
      %950 = vmatpush2.bf16.msra.mxu0 0
      %951 = vmatprep.subr.bf16.mxu0 0
      %952 = vmatpush2.bf16.msra.mxu0 0
      %953 = vmatprep.mubr.bf16.mxu0 0
      %954 = vmatmul.mubr.bf16.gmra.mxu0 %v919
      %v955 = vpop.f32.mrf.mxu0
      %v956 = vadd.f32 0.0, %v955
      %v957 = vpop.f32.mrf.mxu0
      %v958 = vpop.f32.mrf.mxu0
      %v959 = vpop.f32.mrf.mxu0
      %960 = vdwg.mxu0
      %v961 = vpack.c.bf16 %v835, %v835
      %v962 = vld [vmem:[%s628] sm:$0xf]
      %v963 = vld [vmem:[%s628 + $0x4] sm:$0xf]
      %v964 = vld [vmem:[%s628 + $0x8] sm:$0xf]
      %v965 = vld [vmem:[%s628 + $0xc] sm:$0xf]
      %v970 = vunpack.c.l.b16 %v962
      %v971 = vunpack.c.l.b16 %v963
      %v972 = vunpack.c.l.b16 %v964
      %v973 = vunpack.c.l.b16 %v965
      %v974 = vpack.c.b16 %v971, %v970
      %v975 = vpack.c.b16 %v973, %v972
      %v979 = vsel %vm667, %v961, 0
      %981 = vmatprep.subr.bf16.mxu0 0
      %982 = vmatpush1.bf16.msra.mxu0 0
      %983 = vmatprep.subr.bf16.mxu0 0
      %984 = vmatpush1.bf16.msra.mxu0 0
      %985 = vmatprep.subr.bf16.mxu0 0
      %986 = vmatpush1.bf16.msra.mxu0 0
      %987 = vmatprep.subr.bf16.mxu0 0
      %988 = vmatpush1.bf16.msra.mxu0 0
      %989 = vmatprep.subr.bf16.mxu0 0
      %990 = vmatpush1.bf16.msra.mxu0 0
      %991 = vmatprep.subr.bf16.mxu0 0
      %992 = vmatpush1.bf16.msra.mxu0 0
      %993 = vmatprep.subr.bf16.mxu0 0
      %994 = vmatpush1.bf16.msra.mxu0 %v975
      %995 = vmatprep.subr.bf16.mxu0 0
      %996 = vmatpush1.bf16.msra.mxu0 %v974
      %997 = vmatprep.subr.bf16.mxu0 0
      %998 = vmatpush2.bf16.msra.mxu0 0
      %999 = vmatprep.subr.bf16.mxu0 0
      %1000 = vmatpush2.bf16.msra.mxu0 0
      %1001 = vmatprep.subr.bf16.mxu0 0
      %1002 = vmatpush2.bf16.msra.mxu0 0
      %1003 = vmatprep.subr.bf16.mxu0 0
      %1004 = vmatpush2.bf16.msra.mxu0 0
      %1005 = vmatprep.subr.bf16.mxu0 0
      %1006 = vmatpush2.bf16.msra.mxu0 0
      %1007 = vmatprep.subr.bf16.mxu0 0
      %1008 = vmatpush2.bf16.msra.mxu0 0
      %1009 = vmatprep.subr.bf16.mxu0 0
      %1010 = vmatpush2.bf16.msra.mxu0 0
      %1011 = vmatprep.subr.bf16.mxu0 0
      %1012 = vmatpush2.bf16.msra.mxu0 0
      %1013 = vmatprep.mubr.bf16.mxu0 0
      %1014 = vmatmul.mubr.bf16.gmra.mxu0 %v979
      %v1015 = vpop.f32.mrf.mxu0
      %v1016 = vadd.f32 0.0, %v1015
      %v1017 = vpop.f32.mrf.mxu0
      %v1018 = vpop.f32.mrf.mxu0
      %v1019 = vpop.f32.mrf.mxu0
      %1020 = vdwg.mxu0
      %1021 = vst.msk [vmem:[%s640] sm:$0xff] %vm667, %v1016
      %1023 = vrot.lane.b32.xlu0 %v956, 32
      %v1024 = vpop.permute.xlu0 %1023
      %vm1026 = vcmask 523520
      %1027 = vst.msk [vmem:[%s640] sm:$0xff] %vm1026, %v1024
      %p1028 = scmp.lt.s32.totalorder %s39, 10
      %s1029 = scalar_select %p1028, %s39, 10
      %s1030 = smul.addr %s1029, 8
      %s1031 = scalar_lea.vmem %s14, %s1030
      // Predicated region
      $region65: #{_lambda_.6} parent=63 // pred_check
        %p1032 = pneg %p361
      $region66: #{_lambda_.6} parent=63 // pred_check_branch
        %1034 = sbr.rel (%p1032) target = $region68
      $region67: #{_lambda_.6} parent=63 // pred_region
        _
      $region68: #{_lambda_.6} parent=63 // pred_fallthru
        _
    $region64: #{_lambda_.6} parent=5 // pred_fallthru
      _
    %p1035 = scmp.le.s32.totalorder 2, %s34
    // Predicated region
    $region69: #{_lambda_.6} parent=5 // pred_check
      %p1036 = pneg %p1035
    $region70: #{_lambda_.6} parent=5 // pred_check_branch
      %1038 = sbr.rel (%p1036) target = $region72
    $region71: #{_lambda_.6} parent=5 // pred_region
      %s1039 = ssub.s32 %s34, 2
      // Predicated region
      $region73: #{_lambda_.6} parent=71 // pred_check
        %p1040 = pneg %p367
      $region74: #{_lambda_.6} parent=71 // pred_check_branch
        %1042 = sbr.rel (%p1040) target = $region76
      $region75: #{_lambda_.6} parent=71 // pred_region
        %p1043 = scmp.lt.s32.totalorder %s40, 10
        %s1044 = scalar_select %p1043, %s40, 10
        %s1045 = smul.addr %s1044, 8
        %s1046 = scalar_lea.vmem %s14, %s1045
      $region76: #{_lambda_.6} parent=71 // pred_fallthru
        _
    $region72: #{_lambda_.6} parent=5 // pred_fallthru
      _
  $region6: #{_lambda_.6} parent=0 // loop_footer
    %s38 = sadd.s32 1, %s34
  $region7: #{_lambda_.6} parent=0 // loop_footer_branch
    %33 = sbr.rel target = $region3
  $region8: #{_lambda_.6} parent=0 // loop_exit
    _

// kernel: _lambda_.7
$region0: #{_lambda_.7}
  #allocation0 [shape = 'u32[]', space=smem, size = 0x4, offset = 0x4, fixed_abs, tag = 'smem constant byte address 0x4 - core index']
  #allocation1 [shape = 'u32[144,128]{1,0:T(1,128)}', space=vmem, size = 0x12000, scoped, tag = 'internal scratch']
  #allocation2 [shape = 's32[1]{0}', space=sflag, size = 0x4, scoped, tag = 'scoped memory for _lambda_.7']
  #allocation3 [shape = 'u8[512]{0}', space=smem, size = 0x200, scoped, tag = 'prefetched SMEM operand 0']
  %s0 = inlined_call_operand.vmem [shape: s32[4], index: 0, kind: input, shape index: {}]
  %s1 = inlined_call_operand.vmem [shape: bf16[32,32], index: 1, kind: input, shape index: {}]
  %s2 = inlined_call_operand.vmem [shape: f32[32,32], index: 2, kind: input, shape index: {}]
  %s3 = inlined_call_operand.vmem [shape: bf16[2,32,32], index: 3, kind: input, shape index: {}]
  %s4 = inlined_call_operand.vmem [shape: f32[2,1,32], index: 4, kind: input, shape index: {}]
  %s5 = inlined_call_operand.vmem [shape: f32[2,1,1], index: 5, kind: input, shape index: {}]
  %s6 = inlined_call_operand.vmem [shape: f32[32,32], index: 6, kind: output, shape index: {}]
  %s7 = sld [smem:[#allocation0]]
  $region53: #{_lambda_.7} parent=0
    _
  %s9 = ssub.s32 1, %s7
  %s10 = scalar_select 0, %s9, %s7
  %s11 = sshll.u32 %s0, 4
  %s12 = int_to_ptr.vmem [resolvable:$true] %s11
  %14 = dma.vmem_to_smem %s12, 16, [#allocation3], [#allocation2]
  %15 = dma.done [#allocation2], 16
  %16 = sfence
  loop: start=0, step=1, limit=6
  $region2: #{_lambda_.7} parent=0 // loop_pre_header
    _
  $region3: #{_lambda_.7} parent=0 // loop_header
    %s18 = sphi 0, %s22
    %p19 = scmp.ge.s32.totalorder %s18, 6
    %s28 = sphi 0, %s30
    %s31 = sphi 0, %s28
    %s32 = sphi 0, %s31
    %s48 = sphi 0, %s32
    %s54 = sphi 0, %s56
    %s57 = sphi 0, %s54
    %s58 = sphi 0, %s57
    %s74 = sphi 0, %s58
    %s82 = sphi 0, %s84
    %s85 = sphi 0, %s82
    %s86 = sphi 0, %s85
    %s102 = sphi 0, %s86
    %s110 = sphi 0, %s112
    %s113 = sphi 0, %s110
    %s114 = sphi 0, %s113
    %s130 = sphi 0, %s114
    %s138 = sphi 0, %s140
    %s141 = sphi 0, %s138
    %s142 = sphi 0, %s141
    %s158 = sphi 0, %s142
    %s164 = sphi 0, %s166
    %s167 = sphi 0, %s164
    %s168 = sphi 0, %s167
    %s184 = sphi 0, %s168
  $region4: #{_lambda_.7} parent=0 // loop_header_branch
    %21 = sbr.rel (%p19) target = $region8
  $region5: #{_lambda_.7} parent=0 // loop_body
    %s23 = ssub.s32 %s18, 1
    %s24 = ssub.s32 %s18, 2
    %s25 = sadd.s32 %s18, 1
    %s26 = ssub.s32 %s18, %s25
    %p27 = scmp.eq.s32.totalorder %s26, 0
    %s29 = sadd.s32 %s28, 1
    %s30 = scalar_select %p27, %s28, %s29
    %p33 = pneg %p27
    %p34 = scmp.eq.s32.totalorder %s18, 3
    %p35 = por %p33, %p34
    %p36 = scmp.ne.s32.totalorder %s28, %s31
    %p37 = scmp.eq.s32.totalorder %s18, 0
    %p38 = por %p36, %p37
    %p39 = scmp.ne.s32.totalorder %s28, %s31
    %p40 = scmp.eq.s32.totalorder %s23, 3
    %p41 = por %p39, %p40
    %p42 = scmp.ne.s32.totalorder %s31, %s32
    %p43 = scmp.eq.s32.totalorder %s23, 0
    %p44 = por %p42, %p43
    %p45 = scmp.ne.s32.totalorder %s31, %s32
    %p46 = scmp.eq.s32.totalorder %s24, 3
    %p47 = por %p45, %p46
    %p49 = scmp.ne.s32.totalorder %s32, %s48
    %p50 = scmp.eq.s32.totalorder %s24, 0
    %p51 = por %p49, %p50
    %s52 = ssub.s32 %s18, %s25
    %p53 = scmp.eq.s32.totalorder %s52, 0
    %s55 = sadd.s32 %s54, 1
    %s56 = scalar_select %p53, %s54, %s55
    %p59 = pneg %p53
    %p60 = scmp.eq.s32.totalorder %s18, 3
    %p61 = por %p59, %p60
    %p62 = scmp.ne.s32.totalorder %s54, %s57
    %p63 = scmp.eq.s32.totalorder %s18, 0
    %p64 = por %p62, %p63
    %p65 = scmp.ne.s32.totalorder %s54, %s57
    %p66 = scmp.eq.s32.totalorder %s23, 3
    %p67 = por %p65, %p66
    %p68 = scmp.ne.s32.totalorder %s57, %s58
    %p69 = scmp.eq.s32.totalorder %s23, 0
    %p70 = por %p68, %p69
    %p71 = scmp.ne.s32.totalorder %s57, %s58
    %p72 = scmp.eq.s32.totalorder %s24, 3
    %p73 = por %p71, %p72
    %p75 = scmp.ne.s32.totalorder %s58, %s74
    %p76 = scmp.eq.s32.totalorder %s24, 0
    %p77 = por %p75, %p76
    %s78 = sld [smem:[#allocation3 + %s18]]
    %s79 = sld [smem:[#allocation3 + %s25]]
    %s80 = ssub.s32 %s78, %s79
    %p81 = scmp.eq.s32.totalorder %s80, 0
    %s83 = sadd.s32 %s82, 1
    %s84 = scalar_select %p81, %s82, %s83
    %p87 = pneg %p81
    %p88 = scmp.eq.s32.totalorder %s18, 3
    %p89 = por %p87, %p88
    %p90 = scmp.ne.s32.totalorder %s82, %s85
    %p91 = scmp.eq.s32.totalorder %s18, 0
    %p92 = por %p90, %p91
    %p93 = scmp.ne.s32.totalorder %s82, %s85
    %p94 = scmp.eq.s32.totalorder %s23, 3
    %p95 = por %p93, %p94
    %p96 = scmp.ne.s32.totalorder %s85, %s86
    %p97 = scmp.eq.s32.totalorder %s23, 0
    %p98 = por %p96, %p97
    %p99 = scmp.ne.s32.totalorder %s85, %s86
    %p100 = scmp.eq.s32.totalorder %s24, 3
    %p101 = por %p99, %p100
    %p103 = scmp.ne.s32.totalorder %s86, %s102
    %p104 = scmp.eq.s32.totalorder %s24, 0
    %p105 = por %p103, %p104
    %s106 = sld [smem:[#allocation3 + %s18]]
    %s107 = sld [smem:[#allocation3 + %s25]]
    %s108 = ssub.s32 %s106, %s107
    %p109 = scmp.eq.s32.totalorder %s108, 0
    %s111 = sadd.s32 %s110, 1
    %s112 = scalar_select %p109, %s110, %s111
    %p115 = pneg %p109
    %p116 = scmp.eq.s32.totalorder %s18, 3
    %p117 = por %p115, %p116
    %p118 = scmp.ne.s32.totalorder %s110, %s113
    %p119 = scmp.eq.s32.totalorder %s18, 0
    %p120 = por %p118, %p119
    %p121 = scmp.ne.s32.totalorder %s110, %s113
    %p122 = scmp.eq.s32.totalorder %s23, 3
    %p123 = por %p121, %p122
    %p124 = scmp.ne.s32.totalorder %s113, %s114
    %p125 = scmp.eq.s32.totalorder %s23, 0
    %p126 = por %p124, %p125
    %p127 = scmp.ne.s32.totalorder %s113, %s114
    %p128 = scmp.eq.s32.totalorder %s24, 3
    %p129 = por %p127, %p128
    %p131 = scmp.ne.s32.totalorder %s114, %s130
    %p132 = scmp.eq.s32.totalorder %s24, 0
    %p133 = por %p131, %p132
    %s134 = sld [smem:[#allocation3 + %s18]]
    %s135 = sld [smem:[#allocation3 + %s25]]
    %s136 = ssub.s32 %s134, %s135
    %p137 = scmp.eq.s32.totalorder %s136, 0
    %s139 = sadd.s32 %s138, 1
    %s140 = scalar_select %p137, %s138, %s139
    %p143 = pneg %p137
    %p144 = scmp.eq.s32.totalorder %s18, 3
    %p145 = por %p143, %p144
    %p146 = scmp.ne.s32.totalorder %s138, %s141
    %p147 = scmp.eq.s32.totalorder %s18, 0
    %p148 = por %p146, %p147
    %p149 = scmp.ne.s32.totalorder %s138, %s141
    %p150 = scmp.eq.s32.totalorder %s23, 3
    %p151 = por %p149, %p150
    %p152 = scmp.ne.s32.totalorder %s141, %s142
    %p153 = scmp.eq.s32.totalorder %s23, 0
    %p154 = por %p152, %p153
    %p155 = scmp.ne.s32.totalorder %s141, %s142
    %p156 = scmp.eq.s32.totalorder %s24, 3
    %p157 = por %p155, %p156
    %p159 = scmp.ne.s32.totalorder %s142, %s158
    %p160 = scmp.eq.s32.totalorder %s24, 0
    %p161 = por %p159, %p160
    %s162 = ssub.s32 %s18, %s25
    %p163 = scmp.eq.s32.totalorder %s162, 0
    %s165 = sadd.s32 %s164, 1
    %s166 = scalar_select %p163, %s164, %s165
    %p169 = pneg %p163
    %p170 = scmp.eq.s32.totalorder %s18, 3
    %p171 = por %p169, %p170
    %p172 = scmp.ne.s32.totalorder %s164, %s167
    %p173 = scmp.eq.s32.totalorder %s18, 0
    %p174 = por %p172, %p173
    %p175 = scmp.ne.s32.totalorder %s164, %s167
    %p176 = scmp.eq.s32.totalorder %s23, 3
    %p177 = por %p175, %p176
    %p178 = scmp.ne.s32.totalorder %s167, %s168
    %p179 = scmp.eq.s32.totalorder %s23, 0
    %p180 = por %p178, %p179
    %p181 = scmp.ne.s32.totalorder %s167, %s168
    %p182 = scmp.eq.s32.totalorder %s24, 3
    %p183 = por %p181, %p182
    %p185 = scmp.ne.s32.totalorder %s168, %s184
    %p186 = scmp.eq.s32.totalorder %s24, 0
    %p187 = por %p185, %p186
    %p188 = scmp.le.s32.totalorder 1, %s18
    %p189 = scmp.lt.s32.totalorder %s18, 5
    %p190 = pnand %p188, %p189
    %p191 = pneg %p190
    // Predicated region
    $region9: #{_lambda_.7} parent=5 // pred_check
      _
    $region10: #{_lambda_.7} parent=5 // pred_check_branch
      %193 = sbr.rel (%p190) target = $region12
    $region11: #{_lambda_.7} parent=5 // pred_region
      %s194 = ssub.s32 %s18, 1
    $region12: #{_lambda_.7} parent=5 // pred_fallthru
      _
    %p195 = scmp.lt.s32.totalorder %s18, 4
    // Predicated region
    $region13: #{_lambda_.7} parent=5 // pred_check
      %p196 = pneg %p195
    $region14: #{_lambda_.7} parent=5 // pred_check_branch
      %198 = sbr.rel (%p196) target = $region16
    $region15: #{_lambda_.7} parent=5 // pred_region
      // Predicated region
      $region17: #{_lambda_.7} parent=15 // pred_check
        %p199 = pneg %p38
      $region18: #{_lambda_.7} parent=15 // pred_check_branch
        %201 = sbr.rel (%p199) target = $region20
      $region19: #{_lambda_.7} parent=15 // pred_region
        %p202 = scmp.lt.s32.totalorder %s18, 3
        %s203 = scalar_select %p202, %s18, 3
        %s204 = smul.addr %s203, 4
        %s205 = scalar_lea.vmem %s1, %s204
      $region20: #{_lambda_.7} parent=15 // pred_fallthru
        _
      // Predicated region
      $region21: #{_lambda_.7} parent=15 // pred_check
        %p206 = pneg %p64
      $region22: #{_lambda_.7} parent=15 // pred_check_branch
        %208 = sbr.rel (%p206) target = $region24
      $region23: #{_lambda_.7} parent=15 // pred_region
        %p209 = scmp.lt.s32.totalorder %s18, 3
        %s210 = scalar_select %p209, %s18, 3
        %s211 = smul.addr %s210, 8
        %s212 = scalar_lea.vmem %s2, %s211
      $region24: #{_lambda_.7} parent=15 // pred_fallthru
        _
      // Predicated region
      $region25: #{_lambda_.7} parent=15 // pred_check
        %p213 = pneg %p92
      $region26: #{_lambda_.7} parent=15 // pred_check_branch
        %215 = sbr.rel (%p213) target = $region28
      $region27: #{_lambda_.7} parent=15 // pred_region
        %s216 = sld [smem:[#allocation3 + %s18]]
        %p217 = scmp.lt.s32.totalorder %s216, 1
        %s218 = scalar_select %p217, %s216, 1
        %s219 = smul.addr %s218, 4
        %s220 = smul.addr %s219, 4
        %s221 = scalar_lea.vmem %s3, %s220
        %s222 = sld [smem:[#allocation3 + %s18]]
      $region28: #{_lambda_.7} parent=15 // pred_fallthru
        _
      // Predicated region
      $region29: #{_lambda_.7} parent=15 // pred_check
        %p223 = pneg %p120
      $region30: #{_lambda_.7} parent=15 // pred_check_branch
        %225 = sbr.rel (%p223) target = $region32
      $region31: #{_lambda_.7} parent=15 // pred_region
        %s226 = sld [smem:[#allocation3 + %s18]]
        %p227 = scmp.lt.s32.totalorder %s226, 1
        %s228 = scalar_select %p227, %s226, 1
        %s229 = scalar_lea.vmem %s4, %s228
        %s230 = sld [smem:[#allocation3 + %s18]]
      $region32: #{_lambda_.7} parent=15 // pred_fallthru
        _
      // Predicated region
      $region33: #{_lambda_.7} parent=15 // pred_check
        %p231 = pneg %p148
      $region34: #{_lambda_.7} parent=15 // pred_check_branch
        %233 = sbr.rel (%p231) target = $region36
      $region35: #{_lambda_.7} parent=15 // pred_region
        %s234 = sld [smem:[#allocation3 + %s18]]
        %p235 = scmp.lt.s32.totalorder %s234, 1
        %s236 = scalar_select %p235, %s234, 1
        %s237 = scalar_lea.vmem %s5, %s236
        %s238 = sld [smem:[#allocation3 + %s18]]
      $region36: #{_lambda_.7} parent=15 // pred_fallthru
        _
    $region16: #{_lambda_.7} parent=5 // pred_fallthru
      _
    %p239 = scmp.le.s32.totalorder 1, %s18
    %p240 = scmp.lt.s32.totalorder %s18, 5
    %p241 = pnand %p239, %p240
    %p242 = pneg %p241
    // Predicated region
    $region37: #{_lambda_.7} parent=5 // pred_check
      _
    $region38: #{_lambda_.7} parent=5 // pred_check_branch
      %244 = sbr.rel (%p241) target = $region40
    $region39: #{_lambda_.7} parent=5 // pred_region
      %s245 = ssub.s32 %s18, 1
      %p246 = scmp.lt.s32.totalorder %s23, 3
      %s247 = scalar_select %p246, %s23, 3
      %s248 = smul.addr %s247, 4
      %s249 = scalar_lea.vmem %s1, %s248
      %p250 = pneg %p44
      %p251 = pneg %p41
      %p252 = scmp.lt.s32.totalorder %s23, 3
      %s253 = scalar_select %p252, %s23, 3
      %s254 = smul.addr %s253, 8
      %s255 = scalar_lea.vmem %s2, %s254
      %p256 = pneg %p70
      %p257 = pneg %p67
      %s258 = sld [smem:[#allocation3 + %s23]]
      %p259 = scmp.lt.s32.totalorder %s258, 1
      %s260 = scalar_select %p259, %s258, 1
      %s261 = smul.addr %s260, 4
      %s262 = smul.addr %s261, 4
      %s263 = scalar_lea.vmem %s3, %s262
      %p264 = pneg %p98
      %p265 = pneg %p95
      %s266 = sld [smem:[#allocation3 + %s23]]
      %p267 = scmp.lt.s32.totalorder %s266, 1
      %s268 = scalar_select %p267, %s266, 1
      %s269 = scalar_lea.vmem %s4, %s268
      %p270 = pneg %p126
      %p271 = pneg %p123
      %s272 = sld [smem:[#allocation3 + %s23]]
      %p273 = scmp.lt.s32.totalorder %s272, 1
      %s274 = scalar_select %p273, %s272, 1
      %s275 = scalar_lea.vmem %s5, %s274
      %p276 = pneg %p154
      %p277 = pneg %p151
      %p278 = pneg %p180
      %p279 = pneg %p177
      %p280 = scmp.lt.s32.totalorder %s23, 3
      %s281 = scalar_select %p280, %s23, 3
      %s282 = smul.addr %s281, 8
      %s283 = scalar_lea.vmem %s6, %s282
      %p284 = scmp.lt.s32.totalorder %s23, 3
      %s285 = scalar_select %p284, %s23, 3
      %s286 = smul.addr %s285, 4
      %s287 = scalar_lea.vmem %s1, %s286
      %p288 = scmp.lt.s32.totalorder %s23, 3
      %s289 = scalar_select %p288, %s23, 3
      %s290 = smul.addr %s289, 8
      %s291 = scalar_lea.vmem %s2, %s290
      %s292 = sld [smem:[#allocation3 + %s23]]
      %p293 = scmp.lt.s32.totalorder %s292, 1
      %s294 = scalar_select %p293, %s292, 1
      %s295 = smul.addr %s294, 4
      %s296 = smul.addr %s295, 4
      %s297 = scalar_lea.vmem %s3, %s296
      %s298 = sld [smem:[#allocation3 + %s23]]
      %s299 = sld [smem:[#allocation3 + %s23]]
      %p300 = scmp.lt.s32.totalorder %s299, 1
      %s301 = scalar_select %p300, %s299, 1
      %s302 = scalar_lea.vmem %s4, %s301
      %s303 = sld [smem:[#allocation3 + %s23]]
      %s304 = sld [smem:[#allocation3 + %s23]]
      %p305 = scmp.lt.s32.totalorder %s304, 1
      %s306 = scalar_select %p305, %s304, 1
      %s307 = scalar_lea.vmem %s5, %s306
      %s308 = sld [smem:[#allocation3 + %s23]]
      %p309 = scmp.lt.s32.totalorder %s23, 3
      %s310 = scalar_select %p309, %s23, 3
      %s311 = smul.addr %s310, 8
      %s312 = scalar_lea.vmem %s6, %s311
      %v314 = vld [vmem:[%s287] sm:$0xf]
      %v315 = vld [vmem:[%s297] sm:$0xf]
      %v316 = vld [vmem:[%s297 + $0x4] sm:$0xf]
      %v317 = vld [vmem:[%s297 + $0x8] sm:$0xf]
      %v318 = vld [vmem:[%s297 + $0xc] sm:$0xf]
      %v319 = vld [vmem:[%s302] sm:$0x1]
      %v321 = vlaneseq
      %v322 = vshrl.u32 %v321, 7
      %v323 = vsub.s32 0, %v322
      %v324 = vrot.slane %v319, %v323
      %v330 = vunpack.c.l.b16 %v315
      %v331 = vunpack.c.l.b16 %v316
      %v332 = vunpack.c.l.b16 %v317
      %v333 = vunpack.c.l.b16 %v318
      %v334 = vpack.c.b16 %v331, %v330
      %v335 = vpack.c.b16 %v333, %v332
      %vm338 = vcmask 261120
      %v340 = vsel %vm338, %v314, 0
      %342 = vmatprep.subr.bf16.mxu0 0
      %343 = vmatpush1.bf16.msra.mxu0 0
      %344 = vmatprep.subr.bf16.mxu0 0
      %345 = vmatpush1.bf16.msra.mxu0 0
      %346 = vmatprep.subr.bf16.mxu0 0
      %347 = vmatpush1.bf16.msra.mxu0 0
      %348 = vmatprep.subr.bf16.mxu0 0
      %349 = vmatpush1.bf16.msra.mxu0 0
      %350 = vmatprep.subr.bf16.mxu0 0
      %351 = vmatpush1.bf16.msra.mxu0 0
      %352 = vmatprep.subr.bf16.mxu0 0
      %353 = vmatpush1.bf16.msra.mxu0 0
      %354 = vmatprep.subr.bf16.mxu0 0
      %355 = vmatpush1.bf16.msra.mxu0 %v335
      %356 = vmatprep.subr.bf16.mxu0 0
      %357 = vmatpush1.bf16.msra.mxu0 %v334
      %358 = vmatprep.subr.bf16.mxu0 0
      %359 = vmatpush2.bf16.msra.mxu0 0
      %360 = vmatprep.subr.bf16.mxu0 0
      %361 = vmatpush2.bf16.msra.mxu0 0
      %362 = vmatprep.subr.bf16.mxu0 0
      %363 = vmatpush2.bf16.msra.mxu0 0
      %364 = vmatprep.subr.bf16.mxu0 0
      %365 = vmatpush2.bf16.msra.mxu0 0
      %366 = vmatprep.subr.bf16.mxu0 0
      %367 = vmatpush2.bf16.msra.mxu0 0
      %368 = vmatprep.subr.bf16.mxu0 0
      %369 = vmatpush2.bf16.msra.mxu0 0
      %370 = vmatprep.subr.bf16.mxu0 0
      %371 = vmatpush2.bf16.msra.mxu0 0
      %372 = vmatprep.subr.bf16.mxu0 0
      %373 = vmatpush2.bf16.msra.mxu0 0
      %374 = vmatprep.mubr.bf16.mxu0 0
      %375 = vmatmul.mubr.bf16.gmra.mxu0 %v340
      %v376 = vpop.f32.mrf.mxu0
      %v377 = vadd.f32 %v324, %v376
      %v378 = vpop.f32.mrf.mxu0
      %v379 = vpop.f32.mrf.mxu0
      %v380 = vpop.f32.mrf.mxu0
      %381 = vdwg.mxu0
      %v382 = vld [vmem:[%s307] sm:$0x1]
      %v384 = vlaneseq
      %v385 = vshrl.u32 %v384, 7
      %v386 = vsub.s32 0, %v385
      %v387 = vrot.slane %v382, %v386
      %388 = vset.pattern.permute.xlu0 0
      %389 = vperm.xlu0 %388, %v387
      %v390 = vpop.permute.xlu0 %389
      %v392 = vmul.f32 %v377, %v390
      %v393 = vld [vmem:[%s291] sm:$0xff]
      %v394 = vsub.f32 1.0, %v382
      %v396 = vlaneseq
      %v397 = vshrl.u32 %v396, 7
      %v398 = vsub.s32 0, %v397
      %v399 = vrot.slane %v394, %v398
      %400 = vset.pattern.permute.xlu0 0
      %401 = vperm.xlu0 %400, %v399
      %v402 = vpop.permute.xlu0 %401
      %v404 = vmul.f32 %v393, %v402
      %v405 = vadd.f32 %v392, %v404
      %406 = vst.msk [vmem:[%s312] sm:$0xff] %vm338, %v405
      %p407 = scmp.lt.s32.totalorder %s23, 3
      %s408 = scalar_select %p407, %s23, 3
      %s409 = smul.addr %s408, 8
      %s410 = scalar_lea.vmem %s6, %s409
      // Predicated region
      $region41: #{_lambda_.7} parent=39 // pred_check
        %p411 = pneg %p177
      $region42: #{_lambda_.7} parent=39 // pred_check_branch
        %413 = sbr.rel (%p411) target = $region44
      $region43: #{_lambda_.7} parent=39 // pred_region
        _
      $region44: #{_lambda_.7} parent=39 // pred_fallthru
        _
    $region40: #{_lambda_.7} parent=5 // pred_fallthru
      _
    %p414 = scmp.le.s32.totalorder 2, %s18
    // Predicated region
    $region45: #{_lambda_.7} parent=5 // pred_check
      %p415 = pneg %p414
    $region46: #{_lambda_.7} parent=5 // pred_check_branch
      %417 = sbr.rel (%p415) target = $region48
    $region47: #{_lambda_.7} parent=5 // pred_region
      %s418 = ssub.s32 %s18, 2
      // Predicated region
      $region49: #{_lambda_.7} parent=47 // pred_check
        %p419 = pneg %p183
      $region50: #{_lambda_.7} parent=47 // pred_check_branch
        %421 = sbr.rel (%p419) target = $region52
      $region51: #{_lambda_.7} parent=47 // pred_region
        %p422 = scmp.lt.s32.totalorder %s24, 3
        %s423 = scalar_select %p422, %s24, 3
        %s424 = smul.addr %s423, 8
        %s425 = scalar_lea.vmem %s6, %s424
      $region52: #{_lambda_.7} parent=47 // pred_fallthru
        _
    $region48: #{_lambda_.7} parent=5 // pred_fallthru
      _
  $region6: #{_lambda_.7} parent=0 // loop_footer
    %s22 = sadd.s32 1, %s18
  $region7: #{_lambda_.7} parent=0 // loop_footer_branch
    %17 = sbr.rel target = $region3
  $region8: #{_lambda_.7} parent=0 // loop_exit
    _

</llo_original>
